<compile_context>
chip_gen: v7x
topology: tpu7x:2x2x1
jax: 0.10.0
libtpu: 0.0.40
codegen_flags: <defaults>
</compile_context>

<pallas_src>
import numpy as np
import jax
import jax.numpy as jnp
from jax.experimental import pallas as pl
from jax.experimental.pallas import tpu as pltpu

# ---- problem sizes (small, consistent with a 2D triangular mesh) ----
B = 2          # batch
N = 16         # nodes
C = 24         # cells
V = 3          # vertices per cell (space_dim + 1)
S = 2          # space dim
F = 4          # node features
H = 32         # MLP hidden dim (per term)
DIN = V * (S + F)        # cell-feature dim (stationary=True, autonomous=True)
DOUT_FF = V * F          # free-form coefficients per cell
DOUT_TR = F * S          # flow field per cell
DOUT = DOUT_FF + DOUT_TR

R = B * C                # batch-folded cell rows (48)
BN = B * N               # batch-folded node rows (32)

# ---- packed-slab layout constants ----
CELLC_LANES = 256
GEOH_L = 0               # cellc lanes [0, 2H): host-folded geo @ W1_geo + b1
TILE2_L = 128            # cellc lanes [128, 256): convection tiles then free-form data
FFD_T2 = V * S * V * F   # offset of free-form data inside the second lane tile (= 72)

WCONST_ROWS = 96
W1U_R = 0                # rows [0, V*F): first-layer u-feature weights (V*F, 2H)
W2_R = 16                # rows [16, 16+2H): merged head weights (2H, 36)
B2_R = 80                # row 80: merged head bias (1, 36)
TILER_R = 88             # rows [88, 92): (F, V*F) identity tiler
HEADS_W = 3 * V * F      # 36 head lanes: [coeffs | flow s=0 tiled | flow s=1 tiled]


# ---------------------------------------------------------------------------
# Fused kernel: gather -> merged MLP -> free-form + transport messages ->
# scaled scatter-sum to nodes.  One no-grid invocation, batch folded into rows.
# ---------------------------------------------------------------------------
def fen_fused_kernel(u_ref, gmat_ref, cellc_ref, wconst_ref, scat_ref, out_ref):
    dot = lambda a, b: jnp.dot(a, b, preferred_element_type=jnp.float32)

    # ---- gather u at cell vertices, pre-tiled over the test-vertex lane blocks ----
    #   ug_big[v*R + (b*C + c), i*F + f] = u[b, T[c, v], f]
    u_tiled = dot(u_ref[...], wconst_ref[TILER_R:TILER_R + F, 0:V * F])     # (BN, V*F)
    ug_big = dot(gmat_ref[...], u_tiled)                                     # (V*R, V*F)

    # ---- merged hidden layer (free-form + transport MLPs share one tanh pass) ----
    # Geometry rows + bias are host-folded into the geoh lanes of cellc; the three
    # per-vertex u contributions are independent MXU pushes summed once on the VPU.
    w1u = wconst_ref[W1U_R:W1U_R + V * F, :]                                 # (V*F, 2H)
    d0 = dot(ug_big[0 * R:1 * R, 0:F], w1u[0 * F:1 * F, :])
    d1 = dot(ug_big[1 * R:2 * R, 0:F], w1u[1 * F:2 * F, :])
    d2 = dot(ug_big[2 * R:3 * R, 0:F], w1u[2 * F:3 * F, :])
    h = jnp.tanh(cellc_ref[:, GEOH_L:GEOH_L + 2 * H] + d0 + d1 + d2)         # (R, 2H)

    # ---- merged heads with the flow selectors folded into the weights host-side ----
    #   heads[:, v*F+f]                = free-form coefficient (cell, v, f)
    #   heads[:, V*F + s*V*F + i*F+f]  = flow field (cell, f, s), tiled over i
    heads = (dot(h, wconst_ref[W2_R:W2_R + 2 * H, 0:HEADS_W])
             + wconst_ref[B2_R:B2_R + 1, 0:HEADS_W])                         # (R, 36)

    # ---- free-form + transport messages, lane-dense (R, V*F) ----
    ct = cellc_ref[:, TILE2_L:TILE2_L + 128]     # convection tiles + free-form data
    msgs = ct[:, FFD_T2:FFD_T2 + V * F] * heads[:, 0:V * F]
    for j in range(V):
        ugt_j = ug_big[j * R:(j + 1) * R, :]     # u at trial vertex j, tiled over i
        for s in range(S):
            k = j * S + s
            flt_s = heads[:, (1 + s) * V * F:(2 + s) * V * F]
            msgs = msgs + ct[:, k * V * F:(k + 1) * V * F] * (ugt_j * flt_s)

    # ---- scatter-sum to nodes (inv-lumped-mass & fixed-values mask pre-folded) ----
    r0 = dot(scat_ref[0], msgs[:, 0 * F:1 * F])
    r1 = dot(scat_ref[1], msgs[:, 1 * F:2 * F])
    r2 = dot(scat_ref[2], msgs[:, 2 * F:3 * F])
    out_ref[...] = r0 + r1 + r2                                              # (BN, F)


def fen_forward_pallas(u, gmat, cellc, wconst, scat):
    """Single fused no-grid launch; everything resident in VMEM."""
    out = pl.pallas_call(
        fen_fused_kernel,
        out_shape=jax.ShapeDtypeStruct((BN, F), jnp.float32),
        in_specs=[pl.BlockSpec(memory_space=pltpu.MemorySpace.VMEM) for _ in range(5)],
        out_specs=pl.BlockSpec(memory_space=pltpu.MemorySpace.VMEM),
        cost_estimate=pl.CostEstimate(
            flops=460_000, transcendentals=R * 2 * H, bytes_accessed=112_000),
    )(u.reshape(BN, F), gmat, cellc, wconst, scat)
    return out.reshape(B, N, F)


# ---------------------------------------------------------------------------
# Pure-JAX reference of FENDynamics.forward (for verification)
# ---------------------------------------------------------------------------
def reference(u, feats_flat, T, free_form_data, conv_data, inv_mass, mask_f,
              wf1, bf1, wf2, bf2, wt1, bt1, wt2, bt2):
    coeffs = (jnp.tanh(feats_flat @ wf1 + bf1) @ wf2 + bf2).reshape(B, C, V, F)
    flow = (jnp.tanh(feats_flat @ wt1 + bt1) @ wt2 + bt2).reshape(B, C, F, S)
    u_cells = u[:, T]                                            # (B, C, V, F)
    ff = jnp.einsum('vc,bcvf->bcvf', free_form_data, coeffs)
    tr = jnp.einsum('jics,bcjf,bcfs->bcif', conv_data, u_cells, flow)
    msgs = (ff + tr).reshape(B, C * V, F)
    target = T.reshape(-1)
    onehot = (target[:, None] == jnp.arange(N)[None, :]).astype(jnp.float32)  # (C*V, N)
    recv = jnp.einsum('bmf,mn->bnf', msgs, onehot)
    du = recv * inv_mass[None, :, None]
    du = jnp.where(mask_f[None, :, :] > 0.5, 0.0, du)
    return du


if __name__ == "__main__":
    key = jax.random.PRNGKey(0)
    keys = jax.random.split(key, 16)

    # ---- synthetic (deterministic) domain data ----
    node_pos = jax.random.normal(keys[0], (N, S), jnp.float32)
    T = jax.random.randint(keys[1], (C, V), 0, N)                               # triangulation
    free_form_data = 0.1 + jax.random.uniform(keys[2], (V, C), jnp.float32)     # (v, c)
    conv_data = 0.5 * jax.random.normal(keys[3], (V, V, C, S), jnp.float32)     # (j, i, c, s)
    inv_mass = 1.0 / (0.5 + jax.random.uniform(keys[4], (N,), jnp.float32))     # (n,)
    mask_f = jnp.zeros((N, 1), jnp.float32).at[:3, 0].set(1.0)                  # fixed nodes

    # ---- state (t exists in SystemState but is unused since autonomous=True) ----
    u = jax.random.normal(keys[5], (B, N, F), jnp.float32)

    # ---- MLP parameters (deterministic) ----
    wf1 = 0.2 * jax.random.normal(keys[6], (DIN, H), jnp.float32)
    bf1 = 0.1 * jax.random.normal(keys[7], (1, H), jnp.float32)
    wf2 = 0.2 * jax.random.normal(keys[8], (H, DOUT_FF), jnp.float32)
    bf2 = 0.1 * jax.random.normal(keys[9], (1, DOUT_FF), jnp.float32)
    wt1 = 0.2 * jax.random.normal(keys[10], (DIN, H), jnp.float32)
    bt1 = 0.1 * jax.random.normal(keys[11], (1, H), jnp.float32)
    wt2 = 0.2 * jax.random.normal(keys[12], (H, DOUT_TR), jnp.float32)
    bt2 = 0.1 * jax.random.normal(keys[13], (1, DOUT_TR), jnp.float32)

    # ---- one-time host packing (FENDomainInfo-style preprocessing + weight merges) ----
    T_np = np.asarray(T)
    node_pos_np = np.asarray(node_pos)
    vertex_pos = node_pos_np[T_np]                               # (C, V, S)
    cell_centers = vertex_pos.mean(axis=1)                       # (C, S)
    geo = (vertex_pos - cell_centers[:, None, :]).reshape(C, V * S).astype(np.float32)
    geo_big = np.concatenate([geo] * B, axis=0)                  # (B*C, V*S), row r = b*C + c

    wf1_np, bf1_np = np.asarray(wf1), np.asarray(bf1)
    wt1_np, bt1_np = np.asarray(wt1), np.asarray(bt1)
    wf2_np, bf2_np = np.asarray(wf2), np.asarray(bf2)
    wt2_np, bt2_np = np.asarray(wt2), np.asarray(bt2)

    # merged first layer x @ [wf1 | wt1]; geometry part + bias constant-folded on host
    w1cat = np.concatenate([wf1_np, wt1_np], axis=1)             # (DIN, 2H)
    b1cat = np.concatenate([bf1_np, bt1_np], axis=1)             # (1, 2H)
    w1u = w1cat[V * S:]                                          # (V*F, 2H)
    geoh = (geo_big @ w1cat[:V * S] + b1cat).astype(np.float32)  # (B*C, 2H)

    # merged second layer with the per-space flow selectors folded in:
    #   heads = [coeffs (v f) | flow s=0 tiled over i | flow s=1 tiled over i]
    w2big = np.zeros((2 * H, HEADS_W), np.float32)
    b2big = np.zeros((1, HEADS_W), np.float32)
    w2big[:H, :V * F] = wf2_np
    b2big[:, :V * F] = bf2_np
    for s in range(S):
        for f in range(F):
            for i in range(V):
                col = V * F + s * V * F + i * F + f
                w2big[H:, col] = wt2_np[:, f * S + s]
                b2big[0, col] = bt2_np[0, f * S + s]

    # one-hot gather matrix (vertex-major row blocks, batch-block-diagonal):
    #   gmat[v*R + b*C + c, b*N + n] = [T[c, v] == n]
    gmat = np.zeros((V * R, BN), np.float32)
    for v in range(V):
        for b in range(B):
            gmat[v * R + b * C + np.arange(C), b * N + T_np[:, v]] = 1.0

    # free-form data repeated over features: ffd_big[b*C+c, v*F+f] = free_form_data[v, c]
    ff_np = np.asarray(free_form_data)
    ffd_big = np.repeat(ff_np.T, F, axis=1)                      # (C, V*F)
    ffd_big = np.concatenate([ffd_big] * B, axis=0)              # (B*C, V*F)

    # convection tiles: convw[j*S+s][b*C+c, i*F+f] = conv_data[j, i, c, s]
    conv_np = np.asarray(conv_data)
    convw = np.repeat(conv_np.transpose(0, 3, 2, 1).reshape(V * S, C, V), F, axis=-1)
    convw = np.concatenate([convw] * B, axis=1)                  # (V*S, B*C, V*F)

    # per-cell constant slab: lane tile 0 = geoh, lane tile 1 = conv tiles + free-form data
    cellc = np.zeros((R, CELLC_LANES), np.float32)
    cellc[:, GEOH_L:GEOH_L + 2 * H] = geoh
    for k in range(V * S):
        cellc[:, TILE2_L + k * V * F:TILE2_L + (k + 1) * V * F] = convw[k]
    cellc[:, TILE2_L + FFD_T2:TILE2_L + FFD_T2 + V * F] = ffd_big

    # weight slab: [w1u | w2big | b2big | tiler], each block starting at lane 0
    tiler = np.tile(np.eye(F, dtype=np.float32), (1, V))         # (F, V*F)
    wconst = np.zeros((WCONST_ROWS, 2 * H), np.float32)
    wconst[W1U_R:W1U_R + V * F, :] = w1u
    wconst[W2_R:W2_R + 2 * H, :HEADS_W] = w2big
    wconst[B2_R, :HEADS_W] = b2big[0]
    wconst[TILER_R:TILER_R + F, :V * F] = tiler

    # scatter one-hots, batch-block-diagonal, with inv-lumped-mass and the fixed-values
    # mask pre-folded into the rows: scat[i, b*N+n, b*C+c] = [T[c,i]==n] * scale[n]
    scale = np.asarray(inv_mass) * (1.0 - np.asarray(mask_f)[:, 0])
    scat = np.zeros((V, BN, R), np.float32)
    for i in range(V):
        for b in range(B):
            scat[i, b * N + T_np[:, i], b * C + np.arange(C)] = scale[T_np[:, i]]

    # ---- fused Pallas forward (single launch, 5 packed inputs) ----
    du = fen_forward_pallas(u, jnp.asarray(gmat), jnp.asarray(cellc),
                            jnp.asarray(wconst), jnp.asarray(scat))
    du = jax.block_until_ready(du)

    # ---- verify against the pure-JAX reference of the PyTorch forward ----
    feat_u = u[:, T].reshape(B, C, V * F)                         # 'b c v f -> b c (v f)'
    feats = jnp.concatenate(
        [jnp.broadcast_to(jnp.asarray(geo)[None], (B, C, V * S)), feat_u], axis=-1)
    feats_flat = feats.reshape(B * C, DIN)
    du_ref = reference(u, feats_flat, T, free_form_data, conv_data, inv_mass, mask_f,
                       wf1, bf1, wf2, bf2, wt1, bt1, wt2, bt2)

    assert du.shape == (B, N, F)
    max_err = float(jnp.max(jnp.abs(du - du_ref)))
    assert jnp.allclose(du, du_ref, rtol=1e-3, atol=1e-3), f"max err {max_err}"

    print("KERNEL_OK")
</pallas_src>

<mosaic_0001>
module attributes {stable_mosaic.version = 11 : i64} {
  func.func @fen_fused_kernel(%arg0: memref<32x4xf32, #tpu.memory_space<vmem>>, %arg1: memref<144x32xf32, #tpu.memory_space<vmem>>, %arg2: memref<48x256xf32, #tpu.memory_space<vmem>>, %arg3: memref<96x64xf32, #tpu.memory_space<vmem>>, %arg4: memref<3x32x48xf32, #tpu.memory_space<vmem>>, %arg5: memref<32x4xf32, #tpu.memory_space<vmem>>) attributes {dimension_semantics = [], scalar_prefetch = 0 : i64, scratch_operands = 0 : i64, tpu.core_type = #tpu.core_type<tc>} {
    %c0 = arith.constant 0 : index
    %c0_0 = arith.constant 0 : index
    %0 = vector.load %arg0[%c0, %c0_0] : memref<32x4xf32, #tpu.memory_space<vmem>>, vector<32x4xf32>
    %c88 = arith.constant 88 : index
    %c0_1 = arith.constant 0 : index
    %1 = vector.load %arg3[%c88, %c0_1] : memref<96x64xf32, #tpu.memory_space<vmem>>, vector<4x12xf32>
    %cst = arith.constant dense<0.000000e+00> : vector<32x12xf32>
    %2 = tpu.matmul %0, %1, %cst {dimension_numbers = #tpu.dot_dimension_numbers<[1], [0], [0], [1], [0, 0, 1, 1], [], []>} : vector<32x4xf32>, vector<4x12xf32>, vector<32x12xf32> -> vector<32x12xf32>
    %c0_2 = arith.constant 0 : index
    %c0_3 = arith.constant 0 : index
    %3 = vector.load %arg1[%c0_2, %c0_3] : memref<144x32xf32, #tpu.memory_space<vmem>>, vector<144x32xf32>
    %cst_4 = arith.constant dense<0.000000e+00> : vector<144x12xf32>
    %4 = tpu.matmul %3, %2, %cst_4 {dimension_numbers = #tpu.dot_dimension_numbers<[1], [0], [0], [1], [0, 0, 1, 1], [], []>} : vector<144x32xf32>, vector<32x12xf32>, vector<144x12xf32> -> vector<144x12xf32>
    %c0_5 = arith.constant 0 : index
    %c0_6 = arith.constant 0 : index
    %5 = vector.load %arg3[%c0_5, %c0_6] : memref<96x64xf32, #tpu.memory_space<vmem>>, vector<12x64xf32>
    %6 = vector.extract_strided_slice %4 {offsets = [0, 0], sizes = [48, 4], strides = [1, 1]} : vector<144x12xf32> to vector<48x4xf32>
    %7 = vector.extract_strided_slice %5 {offsets = [0, 0], sizes = [4, 64], strides = [1, 1]} : vector<12x64xf32> to vector<4x64xf32>
    %cst_7 = arith.constant dense<0.000000e+00> : vector<48x64xf32>
    %8 = tpu.matmul %6, %7, %cst_7 {dimension_numbers = #tpu.dot_dimension_numbers<[1], [0], [0], [1], [0, 0, 1, 1], [], []>} : vector<48x4xf32>, vector<4x64xf32>, vector<48x64xf32> -> vector<48x64xf32>
    %9 = vector.extract_strided_slice %4 {offsets = [48, 0], sizes = [48, 4], strides = [1, 1]} : vector<144x12xf32> to vector<48x4xf32>
    %10 = vector.extract_strided_slice %5 {offsets = [4, 0], sizes = [4, 64], strides = [1, 1]} : vector<12x64xf32> to vector<4x64xf32>
    %cst_8 = arith.constant dense<0.000000e+00> : vector<48x64xf32>
    %11 = tpu.matmul %9, %10, %cst_8 {dimension_numbers = #tpu.dot_dimension_numbers<[1], [0], [0], [1], [0, 0, 1, 1], [], []>} : vector<48x4xf32>, vector<4x64xf32>, vector<48x64xf32> -> vector<48x64xf32>
    %12 = vector.extract_strided_slice %4 {offsets = [96, 0], sizes = [48, 4], strides = [1, 1]} : vector<144x12xf32> to vector<48x4xf32>
    %13 = vector.extract_strided_slice %5 {offsets = [8, 0], sizes = [4, 64], strides = [1, 1]} : vector<12x64xf32> to vector<4x64xf32>
    %cst_9 = arith.constant dense<0.000000e+00> : vector<48x64xf32>
    %14 = tpu.matmul %12, %13, %cst_9 {dimension_numbers = #tpu.dot_dimension_numbers<[1], [0], [0], [1], [0, 0, 1, 1], [], []>} : vector<48x4xf32>, vector<4x64xf32>, vector<48x64xf32> -> vector<48x64xf32>
    %c0_10 = arith.constant 0 : index
    %c0_11 = arith.constant 0 : index
    %15 = vector.load %arg2[%c0_10, %c0_11] : memref<48x256xf32, #tpu.memory_space<vmem>>, vector<48x64xf32>
    %16 = arith.addf %15, %8 : vector<48x64xf32>
    %17 = arith.addf %16, %11 : vector<48x64xf32>
    %18 = arith.addf %17, %14 : vector<48x64xf32>
    %19 = math.tanh %18 : vector<48x64xf32>
    %c16 = arith.constant 16 : index
    %c0_12 = arith.constant 0 : index
    %20 = vector.load %arg3[%c16, %c0_12] : memref<96x64xf32, #tpu.memory_space<vmem>>, vector<64x36xf32>
    %cst_13 = arith.constant dense<0.000000e+00> : vector<48x36xf32>
    %21 = tpu.matmul %19, %20, %cst_13 {dimension_numbers = #tpu.dot_dimension_numbers<[1], [0], [0], [1], [0, 0, 1, 1], [], []>} : vector<48x64xf32>, vector<64x36xf32>, vector<48x36xf32> -> vector<48x36xf32>
    %c80 = arith.constant 80 : index
    %c0_14 = arith.constant 0 : index
    %22 = vector.load %arg3[%c80, %c0_14] : memref<96x64xf32, #tpu.memory_space<vmem>>, vector<1x36xf32>
    %23 = vector.broadcast %22 : vector<1x36xf32> to vector<48x36xf32>
    %24 = arith.addf %21, %23 : vector<48x36xf32>
    %c0_15 = arith.constant 0 : index
    %c128 = arith.constant 128 : index
    %25 = vector.load %arg2[%c0_15, %c128] : memref<48x256xf32, #tpu.memory_space<vmem>>, vector<48x128xf32>
    %26 = vector.extract_strided_slice %25 {offsets = [0, 72], sizes = [48, 12], strides = [1, 1]} : vector<48x128xf32> to vector<48x12xf32>
    %27 = vector.extract_strided_slice %24 {offsets = [0, 0], sizes = [48, 12], strides = [1, 1]} : vector<48x36xf32> to vector<48x12xf32>
    %28 = arith.mulf %26, %27 : vector<48x12xf32>
    %29 = vector.extract_strided_slice %4 {offsets = [0, 0], sizes = [48, 12], strides = [1, 1]} : vector<144x12xf32> to vector<48x12xf32>
    %30 = vector.extract_strided_slice %24 {offsets = [0, 12], sizes = [48, 12], strides = [1, 1]} : vector<48x36xf32> to vector<48x12xf32>
    %31 = vector.extract_strided_slice %25 {offsets = [0, 0], sizes = [48, 12], strides = [1, 1]} : vector<48x128xf32> to vector<48x12xf32>
    %32 = arith.mulf %29, %30 : vector<48x12xf32>
    %33 = arith.mulf %31, %32 : vector<48x12xf32>
    %34 = arith.addf %28, %33 : vector<48x12xf32>
    %35 = vector.extract_strided_slice %24 {offsets = [0, 24], sizes = [48, 12], strides = [1, 1]} : vector<48x36xf32> to vector<48x12xf32>
    %36 = vector.extract_strided_slice %25 {offsets = [0, 12], sizes = [48, 12], strides = [1, 1]} : vector<48x128xf32> to vector<48x12xf32>
    %37 = arith.mulf %29, %35 : vector<48x12xf32>
    %38 = arith.mulf %36, %37 : vector<48x12xf32>
    %39 = arith.addf %34, %38 : vector<48x12xf32>
    %40 = vector.extract_strided_slice %4 {offsets = [48, 0], sizes = [48, 12], strides = [1, 1]} : vector<144x12xf32> to vector<48x12xf32>
    %41 = vector.extract_strided_slice %24 {offsets = [0, 12], sizes = [48, 12], strides = [1, 1]} : vector<48x36xf32> to vector<48x12xf32>
    %42 = vector.extract_strided_slice %25 {offsets = [0, 24], sizes = [48, 12], strides = [1, 1]} : vector<48x128xf32> to vector<48x12xf32>
    %43 = arith.mulf %40, %41 : vector<48x12xf32>
    %44 = arith.mulf %42, %43 : vector<48x12xf32>
    %45 = arith.addf %39, %44 : vector<48x12xf32>
    %46 = vector.extract_strided_slice %24 {offsets = [0, 24], sizes = [48, 12], strides = [1, 1]} : vector<48x36xf32> to vector<48x12xf32>
    %47 = vector.extract_strided_slice %25 {offsets = [0, 36], sizes = [48, 12], strides = [1, 1]} : vector<48x128xf32> to vector<48x12xf32>
    %48 = arith.mulf %40, %46 : vector<48x12xf32>
    %49 = arith.mulf %47, %48 : vector<48x12xf32>
    %50 = arith.addf %45, %49 : vector<48x12xf32>
    %51 = vector.extract_strided_slice %4 {offsets = [96, 0], sizes = [48, 12], strides = [1, 1]} : vector<144x12xf32> to vector<48x12xf32>
    %52 = vector.extract_strided_slice %24 {offsets = [0, 12], sizes = [48, 12], strides = [1, 1]} : vector<48x36xf32> to vector<48x12xf32>
    %53 = vector.extract_strided_slice %25 {offsets = [0, 48], sizes = [48, 12], strides = [1, 1]} : vector<48x128xf32> to vector<48x12xf32>
    %54 = arith.mulf %51, %52 : vector<48x12xf32>
    %55 = arith.mulf %53, %54 : vector<48x12xf32>
    %56 = arith.addf %50, %55 : vector<48x12xf32>
    %57 = vector.extract_strided_slice %24 {offsets = [0, 24], sizes = [48, 12], strides = [1, 1]} : vector<48x36xf32> to vector<48x12xf32>
    %58 = vector.extract_strided_slice %25 {offsets = [0, 60], sizes = [48, 12], strides = [1, 1]} : vector<48x128xf32> to vector<48x12xf32>
    %59 = arith.mulf %51, %57 : vector<48x12xf32>
    %60 = arith.mulf %58, %59 : vector<48x12xf32>
    %61 = arith.addf %56, %60 : vector<48x12xf32>
    %c0_16 = arith.constant 0 : index
    %c0_17 = arith.constant 0 : index
    %c0_18 = arith.constant 0 : index
    %62 = vector.load %arg4[%c0_16, %c0_17, %c0_18] : memref<3x32x48xf32, #tpu.memory_space<vmem>>, vector<1x32x48xf32>
    %63 = vector.shape_cast %62 : vector<1x32x48xf32> to vector<32x48xf32>
    %64 = vector.extract_strided_slice %61 {offsets = [0, 0], sizes = [48, 4], strides = [1, 1]} : vector<48x12xf32> to vector<48x4xf32>
    %cst_19 = arith.constant dense<0.000000e+00> : vector<32x4xf32>
    %65 = tpu.matmul %63, %64, %cst_19 {dimension_numbers = #tpu.dot_dimension_numbers<[1], [0], [0], [1], [0, 0, 1, 1], [], []>} : vector<32x48xf32>, vector<48x4xf32>, vector<32x4xf32> -> vector<32x4xf32>
    %c1 = arith.constant 1 : index
    %c0_20 = arith.constant 0 : index
    %c0_21 = arith.constant 0 : index
    %66 = vector.load %arg4[%c1, %c0_20, %c0_21] : memref<3x32x48xf32, #tpu.memory_space<vmem>>, vector<1x32x48xf32>
    %67 = vector.shape_cast %66 : vector<1x32x48xf32> to vector<32x48xf32>
    %68 = vector.extract_strided_slice %61 {offsets = [0, 4], sizes = [48, 4], strides = [1, 1]} : vector<48x12xf32> to vector<48x4xf32>
    %cst_22 = arith.constant dense<0.000000e+00> : vector<32x4xf32>
    %69 = tpu.matmul %67, %68, %cst_22 {dimension_numbers = #tpu.dot_dimension_numbers<[1], [0], [0], [1], [0, 0, 1, 1], [], []>} : vector<32x48xf32>, vector<48x4xf32>, vector<32x4xf32> -> vector<32x4xf32>
    %c2 = arith.constant 2 : index
    %c0_23 = arith.constant 0 : index
    %c0_24 = arith.constant 0 : index
    %70 = vector.load %arg4[%c2, %c0_23, %c0_24] : memref<3x32x48xf32, #tpu.memory_space<vmem>>, vector<1x32x48xf32>
    %71 = vector.shape_cast %70 : vector<1x32x48xf32> to vector<32x48xf32>
    %72 = vector.extract_strided_slice %61 {offsets = [0, 8], sizes = [48, 4], strides = [1, 1]} : vector<48x12xf32> to vector<48x4xf32>
    %cst_25 = arith.constant dense<0.000000e+00> : vector<32x4xf32>
    %73 = tpu.matmul %71, %72, %cst_25 {dimension_numbers = #tpu.dot_dimension_numbers<[1], [0], [0], [1], [0, 0, 1, 1], [], []>} : vector<32x48xf32>, vector<48x4xf32>, vector<32x4xf32> -> vector<32x4xf32>
    %74 = arith.addf %65, %69 : vector<32x4xf32>
    %75 = arith.addf %74, %73 : vector<32x4xf32>
    %c0_26 = arith.constant 0 : index
    %c0_27 = arith.constant 0 : index
    %76 = vector.load %arg5[%c0_26, %c0_27] : memref<32x4xf32, #tpu.memory_space<vmem>>, vector<32x4xf32>
    tpu.vector_store %arg5[%c0_26, %c0_27], %75 {strides = array<i32>} : memref<32x4xf32, #tpu.memory_space<vmem>>, vector<32x4xf32>,
    return
  }
}

</mosaic_0001>

<llo_original>
// kernel: tpu_custom_call.1
$region0: #{tpu_custom_call.1}
  #allocation0 [shape = 'u32[]', space=smem, size = 0x4, offset = 0x4, fixed_abs, tag = 'smem constant byte address 0x4 - core index']
  #allocation1 [shape = 'u32[144,128]{1,0:T(1,128)}', space=vmem, size = 0x12000, scoped, tag = 'internal scratch']
  %s0 = inlined_call_operand.vmem [shape: f32[32,4], index: 0, kind: input, shape index: {}]
  %s1 = inlined_call_operand.vmem [shape: f32[144,32], index: 1, kind: input, shape index: {}]
  %s2 = inlined_call_operand.vmem [shape: f32[48,256], index: 2, kind: input, shape index: {}]
  %s3 = inlined_call_operand.vmem [shape: f32[96,64], index: 3, kind: input, shape index: {}]
  %s4 = inlined_call_operand.vmem [shape: f32[3,32,48], index: 4, kind: input, shape index: {}]
  %s5 = inlined_call_operand.vmem [shape: f32[32,4], index: 5, kind: output, shape index: {}]
  %s6 = sld [smem:[#allocation0]]
  $region30: #{tpu_custom_call.1} parent=0
    _
  %s8 = ssub.s32 1, %s6
  %s9 = scalar_select 0, %s8, %s6
  // Predicated region
  $region2: #{tpu_custom_call.1} parent=0 // pred_check
    _
  $region3: #{tpu_custom_call.1} parent=0 // pred_check_branch
    %11 = sbr.rel (0) target = $region5
  $region4: #{tpu_custom_call.1} parent=0 // pred_region
    _
  $region5: #{tpu_custom_call.1} parent=0 // pred_fallthru
    _
  // Predicated region
  $region6: #{tpu_custom_call.1} parent=0 // pred_check
    _
  $region7: #{tpu_custom_call.1} parent=0 // pred_check_branch
    %13 = sbr.rel (0) target = $region9
  $region8: #{tpu_custom_call.1} parent=0 // pred_region
    _
  $region9: #{tpu_custom_call.1} parent=0 // pred_fallthru
    _
  // Predicated region
  $region10: #{tpu_custom_call.1} parent=0 // pred_check
    _
  $region11: #{tpu_custom_call.1} parent=0 // pred_check_branch
    %15 = sbr.rel (0) target = $region13
  $region12: #{tpu_custom_call.1} parent=0 // pred_region
    _
  $region13: #{tpu_custom_call.1} parent=0 // pred_fallthru
    _
  // Predicated region
  $region14: #{tpu_custom_call.1} parent=0 // pred_check
    _
  $region15: #{tpu_custom_call.1} parent=0 // pred_check_branch
    %17 = sbr.rel (0) target = $region17
  $region16: #{tpu_custom_call.1} parent=0 // pred_region
    _
  $region17: #{tpu_custom_call.1} parent=0 // pred_fallthru
    _
  // Predicated region
  $region18: #{tpu_custom_call.1} parent=0 // pred_check
    _
  $region19: #{tpu_custom_call.1} parent=0 // pred_check_branch
    %19 = sbr.rel (0) target = $region21
  $region20: #{tpu_custom_call.1} parent=0 // pred_region
    _
  $region21: #{tpu_custom_call.1} parent=0 // pred_fallthru
    _
  %v20 = vld [vmem:[%s0] sm:$0xff]
  %v21 = vld [vmem:[%s0 + $0x8] sm:$0xff]
  %v22 = vld [vmem:[%s0 + $0x10] sm:$0xff]
  %v23 = vld [vmem:[%s0 + $0x18] sm:$0xff]
  %v24 = vld [vmem:[%s3 + $0x58] sm:$0xf]
  %vm25 = vcmask 31744
  %v27 = vsel %vm25, %v20, 0
  %v30 = vsel %vm25, %v21, 0
  %v33 = vsel %vm25, %v22, 0
  %v36 = vsel %vm25, %v23, 0
  %vm38 = vcmask 1043456
  %v40 = vsel %vm38, %v24, 0
  %42 = vmatprep.subr.mxu0 0.0
  %43 = vmatpush1.msra.mxu0 %v40
  %44 = vmatprep.subr.mxu0 0.0
  %45 = vmatpush1.msra.mxu0 0.0
  %46 = vmatprep.subr.mxu0 0.0
  %47 = vmatpush1.msra.mxu0 0.0
  %48 = vmatprep.subr.mxu0 0.0
  %49 = vmatpush1.msra.mxu0 0.0
  %50 = vmatprep.subr.mxu0 0.0
  %51 = vmatpush1.msra.mxu0 0.0
  %52 = vmatprep.subr.mxu0 0.0
  %53 = vmatpush1.msra.mxu0 0.0
  %54 = vmatprep.subr.mxu0 0.0
  %55 = vmatpush1.msra.mxu0 0.0
  %56 = vmatprep.subr.mxu0 0.0
  %57 = vmatpush1.msra.mxu0 0.0
  %58 = vmatprep.subr.mxu0 0.0
  %59 = vmatpush1.msra.mxu0 0.0
  %60 = vmatprep.subr.mxu0 0.0
  %61 = vmatpush1.msra.mxu0 0.0
  %62 = vmatprep.subr.mxu0 0.0
  %63 = vmatpush1.msra.mxu0 0.0
  %64 = vmatprep.subr.mxu0 0.0
  %65 = vmatpush1.msra.mxu0 0.0
  %66 = vmatprep.subr.mxu0 0.0
  %67 = vmatpush1.msra.mxu0 0.0
  %68 = vmatprep.subr.mxu0 0.0
  %69 = vmatpush1.msra.mxu0 0.0
  %70 = vmatprep.subr.mxu0 0.0
  %71 = vmatpush1.msra.mxu0 0.0
  %72 = vmatprep.subr.mxu0 0.0
  %73 = vmatpush1.msra.mxu0 0.0
  %74 = vmatprep.subr.mxu0 0.0
  %75 = vmatpush1.msra.mxu0 0.0
  %76 = vmatprep.subr.mxu0 0.0
  %77 = vmatpush1.msra.mxu0 0.0
  %78 = vmatprep.subr.mxu0 0.0
  %79 = vmatpush1.msra.mxu0 0.0
  %80 = vmatprep.subr.mxu0 0.0
  %81 = vmatpush1.msra.mxu0 0.0
  %82 = vmatprep.subr.mxu0 0.0
  %83 = vmatpush1.msra.mxu0 0.0
  %84 = vmatprep.subr.mxu0 0.0
  %85 = vmatpush1.msra.mxu0 0.0
  %86 = vmatprep.subr.mxu0 0.0
  %87 = vmatpush1.msra.mxu0 0.0
  %88 = vmatprep.subr.mxu0 0.0
  %89 = vmatpush1.msra.mxu0 0.0
  %90 = vmatprep.subr.mxu0 0.0
  %91 = vmatpush1.msra.mxu0 0.0
  %92 = vmatprep.subr.mxu0 0.0
  %93 = vmatpush1.msra.mxu0 0.0
  %94 = vmatprep.subr.mxu0 0.0
  %95 = vmatpush1.msra.mxu0 0.0
  %96 = vmatprep.subr.mxu0 0.0
  %97 = vmatpush1.msra.mxu0 0.0
  %98 = vmatprep.subr.mxu0 0.0
  %99 = vmatpush1.msra.mxu0 0.0
  %100 = vmatprep.subr.mxu0 0.0
  %101 = vmatpush1.msra.mxu0 0.0
  %102 = vmatprep.subr.mxu0 0.0
  %103 = vmatpush1.msra.mxu0 0.0
  %104 = vmatprep.subr.mxu0 0.0
  %105 = vmatpush1.msra.mxu0 0.0
  %106 = vmatprep.mubr.f32.mxu0 0.0
  %107 = vmatmul.mubr.f32.gmra.mrb[0].mxu0 %v27
  %v108 = vpop.f32.mrb[0].mxu0
  %v109 = vadd.f32 0.0, %v108
  %v110 = vpop.f32.mrb[0].mxu0
  %111 = vmatprep.mubr.f32.mxu0 0.0
  %112 = vmatmul.mubr.f32.gmra.mrb[0].mxu0 %v30
  %v113 = vpop.f32.mrb[0].mxu0
  %v114 = vadd.f32 0.0, %v113
  %v115 = vpop.f32.mrb[0].mxu0
  %116 = vmatprep.mubr.f32.mxu0 0.0
  %117 = vmatmul.mubr.f32.gmra.mrb[0].mxu0 %v33
  %v118 = vpop.f32.mrb[0].mxu0
  %v119 = vadd.f32 0.0, %v118
  %v120 = vpop.f32.mrb[0].mxu0
  %121 = vmatprep.mubr.f32.mxu0 0.0
  %122 = vmatmul.mubr.f32.gmra.mrb[0].mxu0 %v36
  %v123 = vpop.f32.mrb[0].mxu0
  %v124 = vadd.f32 0.0, %v123
  %v125 = vpop.f32.mrb[0].mxu0
  %126 = vdwg.mxu0
  %v127 = vld [vmem:[%s1] sm:$0xff]
  %v128 = vld [vmem:[%s1 + $0x8] sm:$0xff]
  %v129 = vld [vmem:[%s1 + $0x10] sm:$0xff]
  %v130 = vld [vmem:[%s1 + $0x18] sm:$0xff]
  %v131 = vld [vmem:[%s1 + $0x20] sm:$0xff]
  %v132 = vld [vmem:[%s1 + $0x28] sm:$0xff]
  %v133 = vld [vmem:[%s1 + $0x30] sm:$0xff]
  %v134 = vld [vmem:[%s1 + $0x38] sm:$0xff]
  %v135 = vld [vmem:[%s1 + $0x40] sm:$0xff]
  %v136 = vld [vmem:[%s1 + $0x48] sm:$0xff]
  %v137 = vld [vmem:[%s1 + $0x50] sm:$0xff]
  %v138 = vld [vmem:[%s1 + $0x58] sm:$0xff]
  %v139 = vld [vmem:[%s1 + $0x60] sm:$0xff]
  %v140 = vld [vmem:[%s1 + $0x68] sm:$0xff]
  %v141 = vld [vmem:[%s1 + $0x70] sm:$0xff]
  %v142 = vld [vmem:[%s1 + $0x78] sm:$0xff]
  %v143 = vld [vmem:[%s1 + $0x80] sm:$0xff]
  %v144 = vld [vmem:[%s1 + $0x88] sm:$0xff]
  %vm145 = vcmask 261120
  %v147 = vsel %vm145, %v127, 0
  %v150 = vsel %vm145, %v128, 0
  %v153 = vsel %vm145, %v129, 0
  %v156 = vsel %vm145, %v130, 0
  %v159 = vsel %vm145, %v131, 0
  %v162 = vsel %vm145, %v132, 0
  %v165 = vsel %vm145, %v133, 0
  %v168 = vsel %vm145, %v134, 0
  %v171 = vsel %vm145, %v135, 0
  %v174 = vsel %vm145, %v136, 0
  %v177 = vsel %vm145, %v137, 0
  %v180 = vsel %vm145, %v138, 0
  %v183 = vsel %vm145, %v139, 0
  %v186 = vsel %vm145, %v140, 0
  %v189 = vsel %vm145, %v141, 0
  %v192 = vsel %vm145, %v142, 0
  %v195 = vsel %vm145, %v143, 0
  %v198 = vsel %vm145, %v144, 0
  %200 = vmatprep.subr.mxu0 0.0
  %201 = vmatpush1.msra.mxu0 %v109
  %202 = vmatprep.subr.mxu0 0.0
  %203 = vmatpush1.msra.mxu0 %v114
  %204 = vmatprep.subr.mxu0 0.0
  %205 = vmatpush1.msra.mxu0 %v119
  %206 = vmatprep.subr.mxu0 0.0
  %207 = vmatpush1.msra.mxu0 %v124
  %208 = vmatprep.subr.mxu0 0.0
  %209 = vmatpush1.msra.mxu0 0.0
  %210 = vmatprep.subr.mxu0 0.0
  %211 = vmatpush1.msra.mxu0 0.0
  %212 = vmatprep.subr.mxu0 0.0
  %213 = vmatpush1.msra.mxu0 0.0
  %214 = vmatprep.subr.mxu0 0.0
  %215 = vmatpush1.msra.mxu0 0.0
  %216 = vmatprep.subr.mxu0 0.0
  %217 = vmatpush1.msra.mxu0 0.0
  %218 = vmatprep.subr.mxu0 0.0
  %219 = vmatpush1.msra.mxu0 0.0
  %220 = vmatprep.subr.mxu0 0.0
  %221 = vmatpush1.msra.mxu0 0.0
  %222 = vmatprep.subr.mxu0 0.0
  %223 = vmatpush1.msra.mxu0 0.0
  %224 = vmatprep.subr.mxu0 0.0
  %225 = vmatpush1.msra.mxu0 0.0
  %226 = vmatprep.subr.mxu0 0.0
  %227 = vmatpush1.msra.mxu0 0.0
  %228 = vmatprep.subr.mxu0 0.0
  %229 = vmatpush1.msra.mxu0 0.0
  %230 = vmatprep.subr.mxu0 0.0
  %231 = vmatpush1.msra.mxu0 0.0
  %232 = vmatprep.subr.mxu0 0.0
  %233 = vmatpush1.msra.mxu0 0.0
  %234 = vmatprep.subr.mxu0 0.0
  %235 = vmatpush1.msra.mxu0 0.0
  %236 = vmatprep.subr.mxu0 0.0
  %237 = vmatpush1.msra.mxu0 0.0
  %238 = vmatprep.subr.mxu0 0.0
  %239 = vmatpush1.msra.mxu0 0.0
  %240 = vmatprep.subr.mxu0 0.0
  %241 = vmatpush1.msra.mxu0 0.0
  %242 = vmatprep.subr.mxu0 0.0
  %243 = vmatpush1.msra.mxu0 0.0
  %244 = vmatprep.subr.mxu0 0.0
  %245 = vmatpush1.msra.mxu0 0.0
  %246 = vmatprep.subr.mxu0 0.0
  %247 = vmatpush1.msra.mxu0 0.0
  %248 = vmatprep.subr.mxu0 0.0
  %249 = vmatpush1.msra.mxu0 0.0
  %250 = vmatprep.subr.mxu0 0.0
  %251 = vmatpush1.msra.mxu0 0.0
  %252 = vmatprep.subr.mxu0 0.0
  %253 = vmatpush1.msra.mxu0 0.0
  %254 = vmatprep.subr.mxu0 0.0
  %255 = vmatpush1.msra.mxu0 0.0
  %256 = vmatprep.subr.mxu0 0.0
  %257 = vmatpush1.msra.mxu0 0.0
  %258 = vmatprep.subr.mxu0 0.0
  %259 = vmatpush1.msra.mxu0 0.0
  %260 = vmatprep.subr.mxu0 0.0
  %261 = vmatpush1.msra.mxu0 0.0
  %262 = vmatprep.subr.mxu0 0.0
  %263 = vmatpush1.msra.mxu0 0.0
  %264 = vmatprep.mubr.f32.mxu0 0.0
  %265 = vmatmul.mubr.f32.gmra.mrb[0].mxu0 %v147
  %v266 = vpop.f32.mrb[0].mxu0
  %v267 = vadd.f32 0.0, %v266
  %v268 = vpop.f32.mrb[0].mxu0
  %269 = vmatprep.mubr.f32.mxu0 0.0
  %270 = vmatmul.mubr.f32.gmra.mrb[0].mxu0 %v150
  %v271 = vpop.f32.mrb[0].mxu0
  %v272 = vadd.f32 0.0, %v271
  %v273 = vpop.f32.mrb[0].mxu0
  %274 = vmatprep.mubr.f32.mxu0 0.0
  %275 = vmatmul.mubr.f32.gmra.mrb[0].mxu0 %v153
  %v276 = vpop.f32.mrb[0].mxu0
  %v277 = vadd.f32 0.0, %v276
  %v278 = vpop.f32.mrb[0].mxu0
  %279 = vmatprep.mubr.f32.mxu0 0.0
  %280 = vmatmul.mubr.f32.gmra.mrb[0].mxu0 %v156
  %v281 = vpop.f32.mrb[0].mxu0
  %v282 = vadd.f32 0.0, %v281
  %v283 = vpop.f32.mrb[0].mxu0
  %284 = vmatprep.mubr.f32.mxu0 0.0
  %285 = vmatmul.mubr.f32.gmra.mrb[0].mxu0 %v159
  %v286 = vpop.f32.mrb[0].mxu0
  %v287 = vadd.f32 0.0, %v286
  %v288 = vpop.f32.mrb[0].mxu0
  %289 = vmatprep.mubr.f32.mxu0 0.0
  %290 = vmatmul.mubr.f32.gmra.mrb[0].mxu0 %v162
  %v291 = vpop.f32.mrb[0].mxu0
  %v292 = vadd.f32 0.0, %v291
  %v293 = vpop.f32.mrb[0].mxu0
  %294 = vmatprep.mubr.f32.mxu0 0.0
  %295 = vmatmul.mubr.f32.gmra.mrb[0].mxu0 %v165
  %v296 = vpop.f32.mrb[0].mxu0
  %v297 = vadd.f32 0.0, %v296
  %v298 = vpop.f32.mrb[0].mxu0
  %299 = vmatprep.mubr.f32.mxu0 0.0
  %300 = vmatmul.mubr.f32.gmra.mrb[0].mxu0 %v168
  %v301 = vpop.f32.mrb[0].mxu0
  %v302 = vadd.f32 0.0, %v301
  %v303 = vpop.f32.mrb[0].mxu0
  %304 = vmatprep.mubr.f32.mxu0 0.0
  %305 = vmatmul.mubr.f32.gmra.mrb[0].mxu0 %v171
  %v306 = vpop.f32.mrb[0].mxu0
  %v307 = vadd.f32 0.0, %v306
  %v308 = vpop.f32.mrb[0].mxu0
  %309 = vmatprep.mubr.f32.mxu0 0.0
  %310 = vmatmul.mubr.f32.gmra.mrb[0].mxu0 %v174
  %v311 = vpop.f32.mrb[0].mxu0
  %v312 = vadd.f32 0.0, %v311
  %v313 = vpop.f32.mrb[0].mxu0
  %314 = vmatprep.mubr.f32.mxu0 0.0
  %315 = vmatmul.mubr.f32.gmra.mrb[0].mxu0 %v177
  %v316 = vpop.f32.mrb[0].mxu0
  %v317 = vadd.f32 0.0, %v316
  %v318 = vpop.f32.mrb[0].mxu0
  %319 = vmatprep.mubr.f32.mxu0 0.0
  %320 = vmatmul.mubr.f32.gmra.mrb[0].mxu0 %v180
  %v321 = vpop.f32.mrb[0].mxu0
  %v322 = vadd.f32 0.0, %v321
  %v323 = vpop.f32.mrb[0].mxu0
  %324 = vmatprep.mubr.f32.mxu0 0.0
  %325 = vmatmul.mubr.f32.gmra.mrb[0].mxu0 %v183
  %v326 = vpop.f32.mrb[0].mxu0
  %v327 = vadd.f32 0.0, %v326
  %v328 = vpop.f32.mrb[0].mxu0
  %329 = vmatprep.mubr.f32.mxu0 0.0
  %330 = vmatmul.mubr.f32.gmra.mrb[0].mxu0 %v186
  %v331 = vpop.f32.mrb[0].mxu0
  %v332 = vadd.f32 0.0, %v331
  %v333 = vpop.f32.mrb[0].mxu0
  %334 = vmatprep.mubr.f32.mxu0 0.0
  %335 = vmatmul.mubr.f32.gmra.mrb[0].mxu0 %v189
  %v336 = vpop.f32.mrb[0].mxu0
  %v337 = vadd.f32 0.0, %v336
  %v338 = vpop.f32.mrb[0].mxu0
  %339 = vmatprep.mubr.f32.mxu0 0.0
  %340 = vmatmul.mubr.f32.gmra.mrb[0].mxu0 %v192
  %v341 = vpop.f32.mrb[0].mxu0
  %v342 = vadd.f32 0.0, %v341
  %v343 = vpop.f32.mrb[0].mxu0
  %344 = vmatprep.mubr.f32.mxu0 0.0
  %345 = vmatmul.mubr.f32.gmra.mrb[0].mxu0 %v195
  %v346 = vpop.f32.mrb[0].mxu0
  %v347 = vadd.f32 0.0, %v346
  %v348 = vpop.f32.mrb[0].mxu0
  %349 = vmatprep.mubr.f32.mxu0 0.0
  %350 = vmatmul.mubr.f32.gmra.mrb[0].mxu0 %v198
  %v351 = vpop.f32.mrb[0].mxu0
  %v352 = vadd.f32 0.0, %v351
  %v353 = vpop.f32.mrb[0].mxu0
  %354 = vdwg.mxu0
  %v355 = vld [vmem:[%s3] sm:$0xff]
  %v356 = vld [vmem:[%s3 + $0x8] sm:$0xf]
  %v358 = vsel %vm25, %v267, 0
  %v361 = vsel %vm25, %v272, 0
  %v364 = vsel %vm25, %v277, 0
  %v367 = vsel %vm25, %v282, 0
  %v370 = vsel %vm25, %v287, 0
  %v373 = vsel %vm25, %v292, 0
  %v376 = vsel %vm38, %v355, 0
  %378 = vmatprep.subr.mxu0 0.0
  %379 = vmatpush1.msra.mxu0 %v376
  %380 = vmatprep.subr.mxu0 0.0
  %381 = vmatpush1.msra.mxu0 0.0
  %382 = vmatprep.subr.mxu0 0.0
  %383 = vmatpush1.msra.mxu0 0.0
  %384 = vmatprep.subr.mxu0 0.0
  %385 = vmatpush1.msra.mxu0 0.0
  %386 = vmatprep.subr.mxu0 0.0
  %387 = vmatpush1.msra.mxu0 0.0
  %388 = vmatprep.subr.mxu0 0.0
  %389 = vmatpush1.msra.mxu0 0.0
  %390 = vmatprep.subr.mxu0 0.0
  %391 = vmatpush1.msra.mxu0 0.0
  %392 = vmatprep.subr.mxu0 0.0
  %393 = vmatpush1.msra.mxu0 0.0
  %394 = vmatprep.subr.mxu0 0.0
  %395 = vmatpush1.msra.mxu0 0.0
  %396 = vmatprep.subr.mxu0 0.0
  %397 = vmatpush1.msra.mxu0 0.0
  %398 = vmatprep.subr.mxu0 0.0
  %399 = vmatpush1.msra.mxu0 0.0
  %400 = vmatprep.subr.mxu0 0.0
  %401 = vmatpush1.msra.mxu0 0.0
  %402 = vmatprep.subr.mxu0 0.0
  %403 = vmatpush1.msra.mxu0 0.0
  %404 = vmatprep.subr.mxu0 0.0
  %405 = vmatpush1.msra.mxu0 0.0
  %406 = vmatprep.subr.mxu0 0.0
  %407 = vmatpush1.msra.mxu0 0.0
  %408 = vmatprep.subr.mxu0 0.0
  %409 = vmatpush1.msra.mxu0 0.0
  %410 = vmatprep.subr.mxu0 0.0
  %411 = vmatpush1.msra.mxu0 0.0
  %412 = vmatprep.subr.mxu0 0.0
  %413 = vmatpush1.msra.mxu0 0.0
  %414 = vmatprep.subr.mxu0 0.0
  %415 = vmatpush1.msra.mxu0 0.0
  %416 = vmatprep.subr.mxu0 0.0
  %417 = vmatpush1.msra.mxu0 0.0
  %418 = vmatprep.subr.mxu0 0.0
  %419 = vmatpush1.msra.mxu0 0.0
  %420 = vmatprep.subr.mxu0 0.0
  %421 = vmatpush1.msra.mxu0 0.0
  %422 = vmatprep.subr.mxu0 0.0
  %423 = vmatpush1.msra.mxu0 0.0
  %424 = vmatprep.subr.mxu0 0.0
  %425 = vmatpush1.msra.mxu0 0.0
  %426 = vmatprep.subr.mxu0 0.0
  %427 = vmatpush1.msra.mxu0 0.0
  %428 = vmatprep.subr.mxu0 0.0
  %429 = vmatpush1.msra.mxu0 0.0
  %430 = vmatprep.subr.mxu0 0.0
  %431 = vmatpush1.msra.mxu0 0.0
  %432 = vmatprep.subr.mxu0 0.0
  %433 = vmatpush1.msra.mxu0 0.0
  %434 = vmatprep.subr.mxu0 0.0
  %435 = vmatpush1.msra.mxu0 0.0
  %436 = vmatprep.subr.mxu0 0.0
  %437 = vmatpush1.msra.mxu0 0.0
  %438 = vmatprep.subr.mxu0 0.0
  %439 = vmatpush1.msra.mxu0 0.0
  %440 = vmatprep.subr.mxu0 0.0
  %441 = vmatpush1.msra.mxu0 0.0
  %442 = vmatprep.mubr.f32.mxu0 0.0
  %443 = vmatmul.mubr.f32.gmra.mrb[0].mxu0 %v358
  %v444 = vpop.f32.mrb[0].mxu0
  %v445 = vadd.f32 0.0, %v444
  %v446 = vpop.f32.mrb[0].mxu0
  %447 = vmatprep.mubr.f32.mxu0 0.0
  %448 = vmatmul.mubr.f32.gmra.mrb[0].mxu0 %v361
  %v449 = vpop.f32.mrb[0].mxu0
  %v450 = vadd.f32 0.0, %v449
  %v451 = vpop.f32.mrb[0].mxu0
  %452 = vmatprep.mubr.f32.mxu0 0.0
  %453 = vmatmul.mubr.f32.gmra.mrb[0].mxu0 %v364
  %v454 = vpop.f32.mrb[0].mxu0
  %v455 = vadd.f32 0.0, %v454
  %v456 = vpop.f32.mrb[0].mxu0
  %457 = vmatprep.mubr.f32.mxu0 0.0
  %458 = vmatmul.mubr.f32.gmra.mrb[0].mxu0 %v367
  %v459 = vpop.f32.mrb[0].mxu0
  %v460 = vadd.f32 0.0, %v459
  %v461 = vpop.f32.mrb[0].mxu0
  %462 = vmatprep.mubr.f32.mxu0 0.0
  %463 = vmatmul.mubr.f32.gmra.mrb[0].mxu0 %v370
  %v464 = vpop.f32.mrb[0].mxu0
  %v465 = vadd.f32 0.0, %v464
  %v466 = vpop.f32.mrb[0].mxu0
  %467 = vmatprep.mubr.f32.mxu0 0.0
  %468 = vmatmul.mubr.f32.gmra.mrb[0].mxu0 %v373
  %v469 = vpop.f32.mrb[0].mxu0
  %v470 = vadd.f32 0.0, %v469
  %v471 = vpop.f32.mrb[0].mxu0
  %472 = vdwg.mxu0
  %v473 = vrot.slane %v355, 4
  %v475 = vsel %vm25, %v297, 0
  %v478 = vsel %vm25, %v302, 0
  %v481 = vsel %vm25, %v307, 0
  %v484 = vsel %vm25, %v312, 0
  %v487 = vsel %vm25, %v317, 0
  %v490 = vsel %vm25, %v322, 0
  %v492 = vsel %vm38, %v473, 0
  %494 = vmatprep.subr.mxu0 0.0
  %495 = vmatpush1.msra.mxu0 %v492
  %496 = vmatprep.subr.mxu0 0.0
  %497 = vmatpush1.msra.mxu0 0.0
  %498 = vmatprep.subr.mxu0 0.0
  %499 = vmatpush1.msra.mxu0 0.0
  %500 = vmatprep.subr.mxu0 0.0
  %501 = vmatpush1.msra.mxu0 0.0
  %502 = vmatprep.subr.mxu0 0.0
  %503 = vmatpush1.msra.mxu0 0.0
  %504 = vmatprep.subr.mxu0 0.0
  %505 = vmatpush1.msra.mxu0 0.0
  %506 = vmatprep.subr.mxu0 0.0
  %507 = vmatpush1.msra.mxu0 0.0
  %508 = vmatprep.subr.mxu0 0.0
  %509 = vmatpush1.msra.mxu0 0.0
  %510 = vmatprep.subr.mxu0 0.0
  %511 = vmatpush1.msra.mxu0 0.0
  %512 = vmatprep.subr.mxu0 0.0
  %513 = vmatpush1.msra.mxu0 0.0
  %514 = vmatprep.subr.mxu0 0.0
  %515 = vmatpush1.msra.mxu0 0.0
  %516 = vmatprep.subr.mxu0 0.0
  %517 = vmatpush1.msra.mxu0 0.0
  %518 = vmatprep.subr.mxu0 0.0
  %519 = vmatpush1.msra.mxu0 0.0
  %520 = vmatprep.subr.mxu0 0.0
  %521 = vmatpush1.msra.mxu0 0.0
  %522 = vmatprep.subr.mxu0 0.0
  %523 = vmatpush1.msra.mxu0 0.0
  %524 = vmatprep.subr.mxu0 0.0
  %525 = vmatpush1.msra.mxu0 0.0
  %526 = vmatprep.subr.mxu0 0.0
  %527 = vmatpush1.msra.mxu0 0.0
  %528 = vmatprep.subr.mxu0 0.0
  %529 = vmatpush1.msra.mxu0 0.0
  %530 = vmatprep.subr.mxu0 0.0
  %531 = vmatpush1.msra.mxu0 0.0
  %532 = vmatprep.subr.mxu0 0.0
  %533 = vmatpush1.msra.mxu0 0.0
  %534 = vmatprep.subr.mxu0 0.0
  %535 = vmatpush1.msra.mxu0 0.0
  %536 = vmatprep.subr.mxu0 0.0
  %537 = vmatpush1.msra.mxu0 0.0
  %538 = vmatprep.subr.mxu0 0.0
  %539 = vmatpush1.msra.mxu0 0.0
  %540 = vmatprep.subr.mxu0 0.0
  %541 = vmatpush1.msra.mxu0 0.0
  %542 = vmatprep.subr.mxu0 0.0
  %543 = vmatpush1.msra.mxu0 0.0
  %544 = vmatprep.subr.mxu0 0.0
  %545 = vmatpush1.msra.mxu0 0.0
  %546 = vmatprep.subr.mxu0 0.0
  %547 = vmatpush1.msra.mxu0 0.0
  %548 = vmatprep.subr.mxu0 0.0
  %549 = vmatpush1.msra.mxu0 0.0
  %550 = vmatprep.subr.mxu0 0.0
  %551 = vmatpush1.msra.mxu0 0.0
  %552 = vmatprep.subr.mxu0 0.0
  %553 = vmatpush1.msra.mxu0 0.0
  %554 = vmatprep.subr.mxu0 0.0
  %555 = vmatpush1.msra.mxu0 0.0
  %556 = vmatprep.subr.mxu0 0.0
  %557 = vmatpush1.msra.mxu0 0.0
  %558 = vmatprep.mubr.f32.mxu0 0.0
  %559 = vmatmul.mubr.f32.gmra.mrb[0].mxu0 %v475
  %v560 = vpop.f32.mrb[0].mxu0
  %v561 = vadd.f32 0.0, %v560
  %v562 = vpop.f32.mrb[0].mxu0
  %563 = vmatprep.mubr.f32.mxu0 0.0
  %564 = vmatmul.mubr.f32.gmra.mrb[0].mxu0 %v478
  %v565 = vpop.f32.mrb[0].mxu0
  %v566 = vadd.f32 0.0, %v565
  %v567 = vpop.f32.mrb[0].mxu0
  %568 = vmatprep.mubr.f32.mxu0 0.0
  %569 = vmatmul.mubr.f32.gmra.mrb[0].mxu0 %v481
  %v570 = vpop.f32.mrb[0].mxu0
  %v571 = vadd.f32 0.0, %v570
  %v572 = vpop.f32.mrb[0].mxu0
  %573 = vmatprep.mubr.f32.mxu0 0.0
  %574 = vmatmul.mubr.f32.gmra.mrb[0].mxu0 %v484
  %v575 = vpop.f32.mrb[0].mxu0
  %v576 = vadd.f32 0.0, %v575
  %v577 = vpop.f32.mrb[0].mxu0
  %578 = vmatprep.mubr.f32.mxu0 0.0
  %579 = vmatmul.mubr.f32.gmra.mrb[0].mxu0 %v487
  %v580 = vpop.f32.mrb[0].mxu0
  %v581 = vadd.f32 0.0, %v580
  %v582 = vpop.f32.mrb[0].mxu0
  %583 = vmatprep.mubr.f32.mxu0 0.0
  %584 = vmatmul.mubr.f32.gmra.mrb[0].mxu0 %v490
  %v585 = vpop.f32.mrb[0].mxu0
  %v586 = vadd.f32 0.0, %v585
  %v587 = vpop.f32.mrb[0].mxu0
  %588 = vdwg.mxu0
  %v590 = vsel %vm25, %v327, 0
  %v593 = vsel %vm25, %v332, 0
  %v596 = vsel %vm25, %v337, 0
  %v599 = vsel %vm25, %v342, 0
  %v602 = vsel %vm25, %v347, 0
  %v605 = vsel %vm25, %v352, 0
  %v608 = vsel %vm38, %v356, 0
  %610 = vmatprep.subr.mxu0 0.0
  %611 = vmatpush1.msra.mxu0 %v608
  %612 = vmatprep.subr.mxu0 0.0
  %613 = vmatpush1.msra.mxu0 0.0
  %614 = vmatprep.subr.mxu0 0.0
  %615 = vmatpush1.msra.mxu0 0.0
  %616 = vmatprep.subr.mxu0 0.0
  %617 = vmatpush1.msra.mxu0 0.0
  %618 = vmatprep.subr.mxu0 0.0
  %619 = vmatpush1.msra.mxu0 0.0
  %620 = vmatprep.subr.mxu0 0.0
  %621 = vmatpush1.msra.mxu0 0.0
  %622 = vmatprep.subr.mxu0 0.0
  %623 = vmatpush1.msra.mxu0 0.0
  %624 = vmatprep.subr.mxu0 0.0
  %625 = vmatpush1.msra.mxu0 0.0
  %626 = vmatprep.subr.mxu0 0.0
  %627 = vmatpush1.msra.mxu0 0.0
  %628 = vmatprep.subr.mxu0 0.0
  %629 = vmatpush1.msra.mxu0 0.0
  %630 = vmatprep.subr.mxu0 0.0
  %631 = vmatpush1.msra.mxu0 0.0
  %632 = vmatprep.subr.mxu0 0.0
  %633 = vmatpush1.msra.mxu0 0.0
  %634 = vmatprep.subr.mxu0 0.0
  %635 = vmatpush1.msra.mxu0 0.0
  %636 = vmatprep.subr.mxu0 0.0
  %637 = vmatpush1.msra.mxu0 0.0
  %638 = vmatprep.subr.mxu0 0.0
  %639 = vmatpush1.msra.mxu0 0.0
  %640 = vmatprep.subr.mxu0 0.0
  %641 = vmatpush1.msra.mxu0 0.0
  %642 = vmatprep.subr.mxu0 0.0
  %643 = vmatpush1.msra.mxu0 0.0
  %644 = vmatprep.subr.mxu0 0.0
  %645 = vmatpush1.msra.mxu0 0.0
  %646 = vmatprep.subr.mxu0 0.0
  %647 = vmatpush1.msra.mxu0 0.0
  %648 = vmatprep.subr.mxu0 0.0
  %649 = vmatpush1.msra.mxu0 0.0
  %650 = vmatprep.subr.mxu0 0.0
  %651 = vmatpush1.msra.mxu0 0.0
  %652 = vmatprep.subr.mxu0 0.0
  %653 = vmatpush1.msra.mxu0 0.0
  %654 = vmatprep.subr.mxu0 0.0
  %655 = vmatpush1.msra.mxu0 0.0
  %656 = vmatprep.subr.mxu0 0.0
  %657 = vmatpush1.msra.mxu0 0.0
  %658 = vmatprep.subr.mxu0 0.0
  %659 = vmatpush1.msra.mxu0 0.0
  %660 = vmatprep.subr.mxu0 0.0
  %661 = vmatpush1.msra.mxu0 0.0
  %662 = vmatprep.subr.mxu0 0.0
  %663 = vmatpush1.msra.mxu0 0.0
  %664 = vmatprep.subr.mxu0 0.0
  %665 = vmatpush1.msra.mxu0 0.0
  %666 = vmatprep.subr.mxu0 0.0
  %667 = vmatpush1.msra.mxu0 0.0
  %668 = vmatprep.subr.mxu0 0.0
  %669 = vmatpush1.msra.mxu0 0.0
  %670 = vmatprep.subr.mxu0 0.0
  %671 = vmatpush1.msra.mxu0 0.0
  %672 = vmatprep.subr.mxu0 0.0
  %673 = vmatpush1.msra.mxu0 0.0
  %674 = vmatprep.mubr.f32.mxu0 0.0
  %675 = vmatmul.mubr.f32.gmra.mrb[0].mxu0 %v590
  %v676 = vpop.f32.mrb[0].mxu0
  %v677 = vadd.f32 0.0, %v676
  %v678 = vpop.f32.mrb[0].mxu0
  %679 = vmatprep.mubr.f32.mxu0 0.0
  %680 = vmatmul.mubr.f32.gmra.mrb[0].mxu0 %v593
  %v681 = vpop.f32.mrb[0].mxu0
  %v682 = vadd.f32 0.0, %v681
  %v683 = vpop.f32.mrb[0].mxu0
  %684 = vmatprep.mubr.f32.mxu0 0.0
  %685 = vmatmul.mubr.f32.gmra.mrb[0].mxu0 %v596
  %v686 = vpop.f32.mrb[0].mxu0
  %v687 = vadd.f32 0.0, %v686
  %v688 = vpop.f32.mrb[0].mxu0
  %689 = vmatprep.mubr.f32.mxu0 0.0
  %690 = vmatmul.mubr.f32.gmra.mrb[0].mxu0 %v599
  %v691 = vpop.f32.mrb[0].mxu0
  %v692 = vadd.f32 0.0, %v691
  %v693 = vpop.f32.mrb[0].mxu0
  %694 = vmatprep.mubr.f32.mxu0 0.0
  %695 = vmatmul.mubr.f32.gmra.mrb[0].mxu0 %v602
  %v696 = vpop.f32.mrb[0].mxu0
  %v697 = vadd.f32 0.0, %v696
  %v698 = vpop.f32.mrb[0].mxu0
  %699 = vmatprep.mubr.f32.mxu0 0.0
  %700 = vmatmul.mubr.f32.gmra.mrb[0].mxu0 %v605
  %v701 = vpop.f32.mrb[0].mxu0
  %v702 = vadd.f32 0.0, %v701
  %v703 = vpop.f32.mrb[0].mxu0
  %704 = vdwg.mxu0
  %v705 = vld [vmem:[%s2] sm:$0xff]
  %v706 = vld [vmem:[%s2 + $0x10] sm:$0xff]
  %v707 = vld [vmem:[%s2 + $0x20] sm:$0xff]
  %v708 = vld [vmem:[%s2 + $0x30] sm:$0xff]
  %v709 = vld [vmem:[%s2 + $0x40] sm:$0xff]
  %v710 = vld [vmem:[%s2 + $0x50] sm:$0xff]
  %v711 = vadd.f32 %v705, %v445
  %v712 = vadd.f32 %v706, %v450
  %v713 = vadd.f32 %v707, %v455
  %v714 = vadd.f32 %v708, %v460
  %v715 = vadd.f32 %v709, %v465
  %v716 = vadd.f32 %v710, %v470
  %v717 = vadd.f32 %v711, %v561
  %v718 = vadd.f32 %v712, %v566
  %v719 = vadd.f32 %v713, %v571
  %v720 = vadd.f32 %v714, %v576
  %v721 = vadd.f32 %v715, %v581
  %v722 = vadd.f32 %v716, %v586
  %v723 = vadd.f32 %v717, %v677
  %v724 = vadd.f32 %v718, %v682
  %v725 = vadd.f32 %v719, %v687
  %v726 = vadd.f32 %v720, %v692
  %v727 = vadd.f32 %v721, %v697
  %v728 = vadd.f32 %v722, %v702
  %v729 = vtanh.pop %v723
  %v730 = vtanh.pop %v724
  %v731 = vtanh.pop %v725
  %v732 = vtanh.pop %v726
  %v733 = vtanh.pop %v727
  %v734 = vtanh.pop %v728
  %v735 = vld [vmem:[%s3 + $0x10] sm:$0xff]
  %v736 = vld [vmem:[%s3 + $0x18] sm:$0xff]
  %v737 = vld [vmem:[%s3 + $0x20] sm:$0xff]
  %v738 = vld [vmem:[%s3 + $0x28] sm:$0xff]
  %v739 = vld [vmem:[%s3 + $0x30] sm:$0xff]
  %v740 = vld [vmem:[%s3 + $0x38] sm:$0xff]
  %v741 = vld [vmem:[%s3 + $0x40] sm:$0xff]
  %v742 = vld [vmem:[%s3 + $0x48] sm:$0xff]
  %v743 = vld [vmem:[%s3 + $0x50] sm:$0x1]
  %v744 = vlaneseq
  %v745 = vshrl.u32 %v744, 7
  %v746 = vsub.s32 0, %v745
  %v747 = vrot.slane %v743, %v746
  %vm748 = vcmask 523264
  %v750 = vsel %vm748, %v729, 0
  %v753 = vsel %vm748, %v730, 0
  %v756 = vsel %vm748, %v731, 0
  %v759 = vsel %vm748, %v732, 0
  %v762 = vsel %vm748, %v733, 0
  %v765 = vsel %vm748, %v734, 0
  %767 = vmatprep.subr.mxu0 0.0
  %768 = vmatpush1.msra.mxu0 %v735
  %769 = vmatprep.subr.mxu0 0.0
  %770 = vmatpush1.msra.mxu0 %v736
  %771 = vmatprep.subr.mxu0 0.0
  %772 = vmatpush1.msra.mxu0 %v737
  %773 = vmatprep.subr.mxu0 0.0
  %774 = vmatpush1.msra.mxu0 %v738
  %775 = vmatprep.subr.mxu0 0.0
  %776 = vmatpush1.msra.mxu0 %v739
  %777 = vmatprep.subr.mxu0 0.0
  %778 = vmatpush1.msra.mxu0 %v740
  %779 = vmatprep.subr.mxu0 0.0
  %780 = vmatpush1.msra.mxu0 %v741
  %781 = vmatprep.subr.mxu0 0.0
  %782 = vmatpush1.msra.mxu0 %v742
  %783 = vmatprep.subr.mxu0 0.0
  %784 = vmatpush1.msra.mxu0 0.0
  %785 = vmatprep.subr.mxu0 0.0
  %786 = vmatpush1.msra.mxu0 0.0
  %787 = vmatprep.subr.mxu0 0.0
  %788 = vmatpush1.msra.mxu0 0.0
  %789 = vmatprep.subr.mxu0 0.0
  %790 = vmatpush1.msra.mxu0 0.0
  %791 = vmatprep.subr.mxu0 0.0
  %792 = vmatpush1.msra.mxu0 0.0
  %793 = vmatprep.subr.mxu0 0.0
  %794 = vmatpush1.msra.mxu0 0.0
  %795 = vmatprep.subr.mxu0 0.0
  %796 = vmatpush1.msra.mxu0 0.0
  %797 = vmatprep.subr.mxu0 0.0
  %798 = vmatpush1.msra.mxu0 0.0
  %799 = vmatprep.subr.mxu0 0.0
  %800 = vmatpush1.msra.mxu0 0.0
  %801 = vmatprep.subr.mxu0 0.0
  %802 = vmatpush1.msra.mxu0 0.0
  %803 = vmatprep.subr.mxu0 0.0
  %804 = vmatpush1.msra.mxu0 0.0
  %805 = vmatprep.subr.mxu0 0.0
  %806 = vmatpush1.msra.mxu0 0.0
  %807 = vmatprep.subr.mxu0 0.0
  %808 = vmatpush1.msra.mxu0 0.0
  %809 = vmatprep.subr.mxu0 0.0
  %810 = vmatpush1.msra.mxu0 0.0
  %811 = vmatprep.subr.mxu0 0.0
  %812 = vmatpush1.msra.mxu0 0.0
  %813 = vmatprep.subr.mxu0 0.0
  %814 = vmatpush1.msra.mxu0 0.0
  %815 = vmatprep.subr.mxu0 0.0
  %816 = vmatpush1.msra.mxu0 0.0
  %817 = vmatprep.subr.mxu0 0.0
  %818 = vmatpush1.msra.mxu0 0.0
  %819 = vmatprep.subr.mxu0 0.0
  %820 = vmatpush1.msra.mxu0 0.0
  %821 = vmatprep.subr.mxu0 0.0
  %822 = vmatpush1.msra.mxu0 0.0
  %823 = vmatprep.subr.mxu0 0.0
  %824 = vmatpush1.msra.mxu0 0.0
  %825 = vmatprep.subr.mxu0 0.0
  %826 = vmatpush1.msra.mxu0 0.0
  %827 = vmatprep.subr.mxu0 0.0
  %828 = vmatpush1.msra.mxu0 0.0
  %829 = vmatprep.subr.mxu0 0.0
  %830 = vmatpush1.msra.mxu0 0.0
  %831 = vmatprep.mubr.f32.mxu0 0.0
  %832 = vmatmul.mubr.f32.gmra.mrb[0].mxu0 %v750
  %v833 = vpop.f32.mrb[0].mxu0
  %v834 = vadd.f32 %v747, %v833
  %v835 = vpop.f32.mrb[0].mxu0
  %836 = vmatprep.mubr.f32.mxu0 0.0
  %837 = vmatmul.mubr.f32.gmra.mrb[0].mxu0 %v753
  %v838 = vpop.f32.mrb[0].mxu0
  %v839 = vadd.f32 %v747, %v838
  %v840 = vpop.f32.mrb[0].mxu0
  %841 = vmatprep.mubr.f32.mxu0 0.0
  %842 = vmatmul.mubr.f32.gmra.mrb[0].mxu0 %v756
  %v843 = vpop.f32.mrb[0].mxu0
  %v844 = vadd.f32 %v747, %v843
  %v845 = vpop.f32.mrb[0].mxu0
  %846 = vmatprep.mubr.f32.mxu0 0.0
  %847 = vmatmul.mubr.f32.gmra.mrb[0].mxu0 %v759
  %v848 = vpop.f32.mrb[0].mxu0
  %v849 = vadd.f32 %v747, %v848
  %v850 = vpop.f32.mrb[0].mxu0
  %851 = vmatprep.mubr.f32.mxu0 0.0
  %852 = vmatmul.mubr.f32.gmra.mrb[0].mxu0 %v762
  %v853 = vpop.f32.mrb[0].mxu0
  %v854 = vadd.f32 %v747, %v853
  %v855 = vpop.f32.mrb[0].mxu0
  %856 = vmatprep.mubr.f32.mxu0 0.0
  %857 = vmatmul.mubr.f32.gmra.mrb[0].mxu0 %v765
  %v858 = vpop.f32.mrb[0].mxu0
  %v859 = vadd.f32 %v747, %v858
  %v860 = vpop.f32.mrb[0].mxu0
  %861 = vdwg.mxu0
  %v862 = vld [vmem:[%s2 + $0x8] sm:$0xff]
  %v863 = vld [vmem:[%s2 + $0x18] sm:$0xff]
  %v864 = vld [vmem:[%s2 + $0x28] sm:$0xff]
  %v865 = vld [vmem:[%s2 + $0x38] sm:$0xff]
  %v866 = vld [vmem:[%s2 + $0x48] sm:$0xff]
  %v867 = vld [vmem:[%s2 + $0x58] sm:$0xff]
  %874 = vrot.lane.b32.xlu0 %v834, 72
  %v875 = vpop.permute.xlu0 %874
  %876 = vrot.lane.b32.xlu0 %v839, 72
  %v877 = vpop.permute.xlu0 %876
  %878 = vrot.lane.b32.xlu0 %v844, 72
  %v879 = vpop.permute.xlu0 %878
  %880 = vrot.lane.b32.xlu0 %v849, 72
  %v881 = vpop.permute.xlu0 %880
  %882 = vrot.lane.b32.xlu0 %v854, 72
  %v883 = vpop.permute.xlu0 %882
  %884 = vrot.lane.b32.xlu0 %v859, 72
  %v885 = vpop.permute.xlu0 %884
  %v892 = vmul.f32 %v862, %v875
  %v893 = vmul.f32 %v863, %v877
  %v894 = vmul.f32 %v864, %v879
  %v895 = vmul.f32 %v865, %v881
  %v896 = vmul.f32 %v866, %v883
  %v897 = vmul.f32 %v867, %v885
  %898 = vrot.lane.b32.xlu0 %v834, 116
  %v899 = vpop.permute.xlu0 %898
  %900 = vrot.lane.b32.xlu0 %v839, 116
  %v901 = vpop.permute.xlu0 %900
  %902 = vrot.lane.b32.xlu0 %v844, 116
  %v903 = vpop.permute.xlu0 %902
  %904 = vrot.lane.b32.xlu0 %v849, 116
  %v905 = vpop.permute.xlu0 %904
  %906 = vrot.lane.b32.xlu0 %v854, 116
  %v907 = vpop.permute.xlu0 %906
  %908 = vrot.lane.b32.xlu0 %v859, 116
  %v909 = vpop.permute.xlu0 %908
  %v916 = vmul.f32 %v267, %v899
  %v917 = vmul.f32 %v272, %v901
  %v918 = vmul.f32 %v277, %v903
  %v919 = vmul.f32 %v282, %v905
  %v920 = vmul.f32 %v287, %v907
  %v921 = vmul.f32 %v292, %v909
  %v922 = vmul.f32 %v862, %v916
  %v923 = vmul.f32 %v863, %v917
  %v924 = vmul.f32 %v864, %v918
  %v925 = vmul.f32 %v865, %v919
  %v926 = vmul.f32 %v866, %v920
  %v927 = vmul.f32 %v867, %v921
  %934 = vrot.lane.b32.xlu0 %v922, 72
  %v935 = vpop.permute.xlu0 %934
  %936 = vrot.lane.b32.xlu0 %v923, 72
  %v937 = vpop.permute.xlu0 %936
  %938 = vrot.lane.b32.xlu0 %v924, 72
  %v939 = vpop.permute.xlu0 %938
  %940 = vrot.lane.b32.xlu0 %v925, 72
  %v941 = vpop.permute.xlu0 %940
  %942 = vrot.lane.b32.xlu0 %v926, 72
  %v943 = vpop.permute.xlu0 %942
  %944 = vrot.lane.b32.xlu0 %v927, 72
  %v945 = vpop.permute.xlu0 %944
  %v952 = vadd.f32 %v892, %v935
  %v953 = vadd.f32 %v893, %v937
  %v954 = vadd.f32 %v894, %v939
  %v955 = vadd.f32 %v895, %v941
  %v956 = vadd.f32 %v896, %v943
  %v957 = vadd.f32 %v897, %v945
  %958 = vrot.lane.b32.xlu0 %v834, 104
  %v959 = vpop.permute.xlu0 %958
  %960 = vrot.lane.b32.xlu0 %v839, 104
  %v961 = vpop.permute.xlu0 %960
  %962 = vrot.lane.b32.xlu0 %v844, 104
  %v963 = vpop.permute.xlu0 %962
  %964 = vrot.lane.b32.xlu0 %v849, 104
  %v965 = vpop.permute.xlu0 %964
  %966 = vrot.lane.b32.xlu0 %v854, 104
  %v967 = vpop.permute.xlu0 %966
  %968 = vrot.lane.b32.xlu0 %v859, 104
  %v969 = vpop.permute.xlu0 %968
  %v976 = vmul.f32 %v267, %v959
  %v977 = vmul.f32 %v272, %v961
  %v978 = vmul.f32 %v277, %v963
  %v979 = vmul.f32 %v282, %v965
  %v980 = vmul.f32 %v287, %v967
  %v981 = vmul.f32 %v292, %v969
  %988 = vrot.lane.b32.xlu0 %v976, 12
  %v989 = vpop.permute.xlu0 %988
  %990 = vrot.lane.b32.xlu0 %v977, 12
  %v991 = vpop.permute.xlu0 %990
  %992 = vrot.lane.b32.xlu0 %v978, 12
  %v993 = vpop.permute.xlu0 %992
  %994 = vrot.lane.b32.xlu0 %v979, 12
  %v995 = vpop.permute.xlu0 %994
  %996 = vrot.lane.b32.xlu0 %v980, 12
  %v997 = vpop.permute.xlu0 %996
  %998 = vrot.lane.b32.xlu0 %v981, 12
  %v999 = vpop.permute.xlu0 %998
  %v1006 = vmul.f32 %v862, %v989
  %v1007 = vmul.f32 %v863, %v991
  %v1008 = vmul.f32 %v864, %v993
  %v1009 = vmul.f32 %v865, %v995
  %v1010 = vmul.f32 %v866, %v997
  %v1011 = vmul.f32 %v867, %v999
  %1018 = vrot.lane.b32.xlu0 %v1006, 60
  %v1019 = vpop.permute.xlu0 %1018
  %1020 = vrot.lane.b32.xlu0 %v1007, 60
  %v1021 = vpop.permute.xlu0 %1020
  %1022 = vrot.lane.b32.xlu0 %v1008, 60
  %v1023 = vpop.permute.xlu0 %1022
  %1024 = vrot.lane.b32.xlu0 %v1009, 60
  %v1025 = vpop.permute.xlu0 %1024
  %1026 = vrot.lane.b32.xlu0 %v1010, 60
  %v1027 = vpop.permute.xlu0 %1026
  %1028 = vrot.lane.b32.xlu0 %v1011, 60
  %v1029 = vpop.permute.xlu0 %1028
  %v1036 = vadd.f32 %v952, %v1019
  %v1037 = vadd.f32 %v953, %v1021
  %v1038 = vadd.f32 %v954, %v1023
  %v1039 = vadd.f32 %v955, %v1025
  %v1040 = vadd.f32 %v956, %v1027
  %v1041 = vadd.f32 %v957, %v1029
  %v1042 = vmul.f32 %v297, %v899
  %v1043 = vmul.f32 %v302, %v901
  %v1044 = vmul.f32 %v307, %v903
  %v1045 = vmul.f32 %v312, %v905
  %v1046 = vmul.f32 %v317, %v907
  %v1047 = vmul.f32 %v322, %v909
  %1054 = vrot.lane.b32.xlu0 %v1042, 24
  %v1055 = vpop.permute.xlu0 %1054
  %1056 = vrot.lane.b32.xlu0 %v1043, 24
  %v1057 = vpop.permute.xlu0 %1056
  %1058 = vrot.lane.b32.xlu0 %v1044, 24
  %v1059 = vpop.permute.xlu0 %1058
  %1060 = vrot.lane.b32.xlu0 %v1045, 24
  %v1061 = vpop.permute.xlu0 %1060
  %1062 = vrot.lane.b32.xlu0 %v1046, 24
  %v1063 = vpop.permute.xlu0 %1062
  %1064 = vrot.lane.b32.xlu0 %v1047, 24
  %v1065 = vpop.permute.xlu0 %1064
  %v1072 = vmul.f32 %v862, %v1055
  %v1073 = vmul.f32 %v863, %v1057
  %v1074 = vmul.f32 %v864, %v1059
  %v1075 = vmul.f32 %v865, %v1061
  %v1076 = vmul.f32 %v866, %v1063
  %v1077 = vmul.f32 %v867, %v1065
  %1084 = vrot.lane.b32.xlu0 %v1072, 48
  %v1085 = vpop.permute.xlu0 %1084
  %1086 = vrot.lane.b32.xlu0 %v1073, 48
  %v1087 = vpop.permute.xlu0 %1086
  %1088 = vrot.lane.b32.xlu0 %v1074, 48
  %v1089 = vpop.permute.xlu0 %1088
  %1090 = vrot.lane.b32.xlu0 %v1075, 48
  %v1091 = vpop.permute.xlu0 %1090
  %1092 = vrot.lane.b32.xlu0 %v1076, 48
  %v1093 = vpop.permute.xlu0 %1092
  %1094 = vrot.lane.b32.xlu0 %v1077, 48
  %v1095 = vpop.permute.xlu0 %1094
  %v1102 = vadd.f32 %v1036, %v1085
  %v1103 = vadd.f32 %v1037, %v1087
  %v1104 = vadd.f32 %v1038, %v1089
  %v1105 = vadd.f32 %v1039, %v1091
  %v1106 = vadd.f32 %v1040, %v1093
  %v1107 = vadd.f32 %v1041, %v1095
  %v1108 = vmul.f32 %v297, %v959
  %v1109 = vmul.f32 %v302, %v961
  %v1110 = vmul.f32 %v307, %v963
  %v1111 = vmul.f32 %v312, %v965
  %v1112 = vmul.f32 %v317, %v967
  %v1113 = vmul.f32 %v322, %v969
  %1120 = vrot.lane.b32.xlu0 %v1108, 36
  %v1121 = vpop.permute.xlu0 %1120
  %1122 = vrot.lane.b32.xlu0 %v1109, 36
  %v1123 = vpop.permute.xlu0 %1122
  %1124 = vrot.lane.b32.xlu0 %v1110, 36
  %v1125 = vpop.permute.xlu0 %1124
  %1126 = vrot.lane.b32.xlu0 %v1111, 36
  %v1127 = vpop.permute.xlu0 %1126
  %1128 = vrot.lane.b32.xlu0 %v1112, 36
  %v1129 = vpop.permute.xlu0 %1128
  %1130 = vrot.lane.b32.xlu0 %v1113, 36
  %v1131 = vpop.permute.xlu0 %1130
  %v1138 = vmul.f32 %v862, %v1121
  %v1139 = vmul.f32 %v863, %v1123
  %v1140 = vmul.f32 %v864, %v1125
  %v1141 = vmul.f32 %v865, %v1127
  %v1142 = vmul.f32 %v866, %v1129
  %v1143 = vmul.f32 %v867, %v1131
  %1150 = vrot.lane.b32.xlu0 %v1138, 36
  %v1151 = vpop.permute.xlu0 %1150
  %1152 = vrot.lane.b32.xlu0 %v1139, 36
  %v1153 = vpop.permute.xlu0 %1152
  %1154 = vrot.lane.b32.xlu0 %v1140, 36
  %v1155 = vpop.permute.xlu0 %1154
  %1156 = vrot.lane.b32.xlu0 %v1141, 36
  %v1157 = vpop.permute.xlu0 %1156
  %1158 = vrot.lane.b32.xlu0 %v1142, 36
  %v1159 = vpop.permute.xlu0 %1158
  %1160 = vrot.lane.b32.xlu0 %v1143, 36
  %v1161 = vpop.permute.xlu0 %1160
  %v1168 = vadd.f32 %v1102, %v1151
  %v1169 = vadd.f32 %v1103, %v1153
  %v1170 = vadd.f32 %v1104, %v1155
  %v1171 = vadd.f32 %v1105, %v1157
  %v1172 = vadd.f32 %v1106, %v1159
  %v1173 = vadd.f32 %v1107, %v1161
  %v1174 = vmul.f32 %v327, %v899
  %v1175 = vmul.f32 %v332, %v901
  %v1176 = vmul.f32 %v337, %v903
  %v1177 = vmul.f32 %v342, %v905
  %v1178 = vmul.f32 %v347, %v907
  %v1179 = vmul.f32 %v352, %v909
  %1186 = vrot.lane.b32.xlu0 %v1174, 48
  %v1187 = vpop.permute.xlu0 %1186
  %1188 = vrot.lane.b32.xlu0 %v1175, 48
  %v1189 = vpop.permute.xlu0 %1188
  %1190 = vrot.lane.b32.xlu0 %v1176, 48
  %v1191 = vpop.permute.xlu0 %1190
  %1192 = vrot.lane.b32.xlu0 %v1177, 48
  %v1193 = vpop.permute.xlu0 %1192
  %1194 = vrot.lane.b32.xlu0 %v1178, 48
  %v1195 = vpop.permute.xlu0 %1194
  %1196 = vrot.lane.b32.xlu0 %v1179, 48
  %v1197 = vpop.permute.xlu0 %1196
  %v1204 = vmul.f32 %v862, %v1187
  %v1205 = vmul.f32 %v863, %v1189
  %v1206 = vmul.f32 %v864, %v1191
  %v1207 = vmul.f32 %v865, %v1193
  %v1208 = vmul.f32 %v866, %v1195
  %v1209 = vmul.f32 %v867, %v1197
  %1216 = vrot.lane.b32.xlu0 %v1204, 24
  %v1217 = vpop.permute.xlu0 %1216
  %1218 = vrot.lane.b32.xlu0 %v1205, 24
  %v1219 = vpop.permute.xlu0 %1218
  %1220 = vrot.lane.b32.xlu0 %v1206, 24
  %v1221 = vpop.permute.xlu0 %1220
  %1222 = vrot.lane.b32.xlu0 %v1207, 24
  %v1223 = vpop.permute.xlu0 %1222
  %1224 = vrot.lane.b32.xlu0 %v1208, 24
  %v1225 = vpop.permute.xlu0 %1224
  %1226 = vrot.lane.b32.xlu0 %v1209, 24
  %v1227 = vpop.permute.xlu0 %1226
  %v1234 = vadd.f32 %v1168, %v1217
  %v1235 = vadd.f32 %v1169, %v1219
  %v1236 = vadd.f32 %v1170, %v1221
  %v1237 = vadd.f32 %v1171, %v1223
  %v1238 = vadd.f32 %v1172, %v1225
  %v1239 = vadd.f32 %v1173, %v1227
  %v1240 = vmul.f32 %v327, %v959
  %v1241 = vmul.f32 %v332, %v961
  %v1242 = vmul.f32 %v337, %v963
  %v1243 = vmul.f32 %v342, %v965
  %v1244 = vmul.f32 %v347, %v967
  %v1245 = vmul.f32 %v352, %v969
  %1252 = vrot.lane.b32.xlu0 %v1240, 60
  %v1253 = vpop.permute.xlu0 %1252
  %1254 = vrot.lane.b32.xlu0 %v1241, 60
  %v1255 = vpop.permute.xlu0 %1254
  %1256 = vrot.lane.b32.xlu0 %v1242, 60
  %v1257 = vpop.permute.xlu0 %1256
  %1258 = vrot.lane.b32.xlu0 %v1243, 60
  %v1259 = vpop.permute.xlu0 %1258
  %1260 = vrot.lane.b32.xlu0 %v1244, 60
  %v1261 = vpop.permute.xlu0 %1260
  %1262 = vrot.lane.b32.xlu0 %v1245, 60
  %v1263 = vpop.permute.xlu0 %1262
  %v1270 = vmul.f32 %v862, %v1253
  %v1271 = vmul.f32 %v863, %v1255
  %v1272 = vmul.f32 %v864, %v1257
  %v1273 = vmul.f32 %v865, %v1259
  %v1274 = vmul.f32 %v866, %v1261
  %v1275 = vmul.f32 %v867, %v1263
  %1282 = vrot.lane.b32.xlu0 %v1270, 12
  %v1283 = vpop.permute.xlu0 %1282
  %1284 = vrot.lane.b32.xlu0 %v1271, 12
  %v1285 = vpop.permute.xlu0 %1284
  %1286 = vrot.lane.b32.xlu0 %v1272, 12
  %v1287 = vpop.permute.xlu0 %1286
  %1288 = vrot.lane.b32.xlu0 %v1273, 12
  %v1289 = vpop.permute.xlu0 %1288
  %1290 = vrot.lane.b32.xlu0 %v1274, 12
  %v1291 = vpop.permute.xlu0 %1290
  %1292 = vrot.lane.b32.xlu0 %v1275, 12
  %v1293 = vpop.permute.xlu0 %1292
  %v1300 = vadd.f32 %v1234, %v1283
  %v1301 = vadd.f32 %v1235, %v1285
  %v1302 = vadd.f32 %v1236, %v1287
  %v1303 = vadd.f32 %v1237, %v1289
  %v1304 = vadd.f32 %v1238, %v1291
  %v1305 = vadd.f32 %v1239, %v1293
  %v1306 = vld [vmem:[%s4] sm:$0xff]
  %v1307 = vld [vmem:[%s4 + $0x8] sm:$0xff]
  %v1308 = vld [vmem:[%s4 + $0x10] sm:$0xff]
  %v1309 = vld [vmem:[%s4 + $0x18] sm:$0xff]
  %s1310 = scalar_lea.vmem %s4, 32
  %v1311 = vld [vmem:[%s1310] sm:$0xff]
  %v1312 = vld [vmem:[%s1310 + $0x8] sm:$0xff]
  %v1313 = vld [vmem:[%s1310 + $0x10] sm:$0xff]
  %v1314 = vld [vmem:[%s1310 + $0x18] sm:$0xff]
  %1321 = vrot.lane.b32.xlu0 %v1300, 52
  %v1322 = vpop.permute.xlu0 %1321
  %1323 = vrot.lane.b32.xlu0 %v1301, 52
  %v1324 = vpop.permute.xlu0 %1323
  %1325 = vrot.lane.b32.xlu0 %v1302, 52
  %v1326 = vpop.permute.xlu0 %1325
  %1327 = vrot.lane.b32.xlu0 %v1303, 52
  %v1328 = vpop.permute.xlu0 %1327
  %1329 = vrot.lane.b32.xlu0 %v1304, 52
  %v1330 = vpop.permute.xlu0 %1329
  %1331 = vrot.lane.b32.xlu0 %v1305, 52
  %v1332 = vpop.permute.xlu0 %1331
  %vm1339 = vcmask 392192
  %v1341 = vsel %vm1339, %v1311, 0
  %v1344 = vsel %vm1339, %v1312, 0
  %v1347 = vsel %vm1339, %v1313, 0
  %v1350 = vsel %vm1339, %v1314, 0
  %1352 = vmatprep.subr.mxu0 0.0
  %1353 = vmatpush1.msra.mxu0 %v1322
  %1354 = vmatprep.subr.mxu0 0.0
  %1355 = vmatpush1.msra.mxu0 %v1324
  %1356 = vmatprep.subr.mxu0 0.0
  %1357 = vmatpush1.msra.mxu0 %v1326
  %1358 = vmatprep.subr.mxu0 0.0
  %1359 = vmatpush1.msra.mxu0 %v1328
  %1360 = vmatprep.subr.mxu0 0.0
  %1361 = vmatpush1.msra.mxu0 %v1330
  %1362 = vmatprep.subr.mxu0 0.0
  %1363 = vmatpush1.msra.mxu0 %v1332
  %1364 = vmatprep.subr.mxu0 0.0
  %1365 = vmatpush1.msra.mxu0 0.0
  %1366 = vmatprep.subr.mxu0 0.0
  %1367 = vmatpush1.msra.mxu0 0.0
  %1368 = vmatprep.subr.mxu0 0.0
  %1369 = vmatpush1.msra.mxu0 0.0
  %1370 = vmatprep.subr.mxu0 0.0
  %1371 = vmatpush1.msra.mxu0 0.0
  %1372 = vmatprep.subr.mxu0 0.0
  %1373 = vmatpush1.msra.mxu0 0.0
  %1374 = vmatprep.subr.mxu0 0.0
  %1375 = vmatpush1.msra.mxu0 0.0
  %1376 = vmatprep.subr.mxu0 0.0
  %1377 = vmatpush1.msra.mxu0 0.0
  %1378 = vmatprep.subr.mxu0 0.0
  %1379 = vmatpush1.msra.mxu0 0.0
  %1380 = vmatprep.subr.mxu0 0.0
  %1381 = vmatpush1.msra.mxu0 0.0
  %1382 = vmatprep.subr.mxu0 0.0
  %1383 = vmatpush1.msra.mxu0 0.0
  %1384 = vmatprep.subr.mxu0 0.0
  %1385 = vmatpush1.msra.mxu0 0.0
  %1386 = vmatprep.subr.mxu0 0.0
  %1387 = vmatpush1.msra.mxu0 0.0
  %1388 = vmatprep.subr.mxu0 0.0
  %1389 = vmatpush1.msra.mxu0 0.0
  %1390 = vmatprep.subr.mxu0 0.0
  %1391 = vmatpush1.msra.mxu0 0.0
  %1392 = vmatprep.subr.mxu0 0.0
  %1393 = vmatpush1.msra.mxu0 0.0
  %1394 = vmatprep.subr.mxu0 0.0
  %1395 = vmatpush1.msra.mxu0 0.0
  %1396 = vmatprep.subr.mxu0 0.0
  %1397 = vmatpush1.msra.mxu0 0.0
  %1398 = vmatprep.subr.mxu0 0.0
  %1399 = vmatpush1.msra.mxu0 0.0
  %1400 = vmatprep.subr.mxu0 0.0
  %1401 = vmatpush1.msra.mxu0 0.0
  %1402 = vmatprep.subr.mxu0 0.0
  %1403 = vmatpush1.msra.mxu0 0.0
  %1404 = vmatprep.subr.mxu0 0.0
  %1405 = vmatpush1.msra.mxu0 0.0
  %1406 = vmatprep.subr.mxu0 0.0
  %1407 = vmatpush1.msra.mxu0 0.0
  %1408 = vmatprep.subr.mxu0 0.0
  %1409 = vmatpush1.msra.mxu0 0.0
  %1410 = vmatprep.subr.mxu0 0.0
  %1411 = vmatpush1.msra.mxu0 0.0
  %1412 = vmatprep.subr.mxu0 0.0
  %1413 = vmatpush1.msra.mxu0 0.0
  %1414 = vmatprep.subr.mxu0 0.0
  %1415 = vmatpush1.msra.mxu0 0.0
  %1416 = vmatprep.mubr.f32.mxu0 0.0
  %1417 = vmatmul.mubr.f32.gmra.mrb[0].mxu0 %v1341
  %v1418 = vpop.f32.mrb[0].mxu0
  %v1419 = vadd.f32 0.0, %v1418
  %v1420 = vpop.f32.mrb[0].mxu0
  %1421 = vmatprep.mubr.f32.mxu0 0.0
  %1422 = vmatmul.mubr.f32.gmra.mrb[0].mxu0 %v1344
  %v1423 = vpop.f32.mrb[0].mxu0
  %v1424 = vadd.f32 0.0, %v1423
  %v1425 = vpop.f32.mrb[0].mxu0
  %1426 = vmatprep.mubr.f32.mxu0 0.0
  %1427 = vmatmul.mubr.f32.gmra.mrb[0].mxu0 %v1347
  %v1428 = vpop.f32.mrb[0].mxu0
  %v1429 = vadd.f32 0.0, %v1428
  %v1430 = vpop.f32.mrb[0].mxu0
  %1431 = vmatprep.mubr.f32.mxu0 0.0
  %1432 = vmatmul.mubr.f32.gmra.mrb[0].mxu0 %v1350
  %v1433 = vpop.f32.mrb[0].mxu0
  %v1434 = vadd.f32 0.0, %v1433
  %v1435 = vpop.f32.mrb[0].mxu0
  %1436 = vdwg.mxu0
  %s1437 = scalar_lea.vmem %s4, 64
  %v1438 = vld [vmem:[%s1437] sm:$0xff]
  %v1439 = vld [vmem:[%s1437 + $0x8] sm:$0xff]
  %v1440 = vld [vmem:[%s1437 + $0x10] sm:$0xff]
  %v1441 = vld [vmem:[%s1437 + $0x18] sm:$0xff]
  %1442 = vrot.lane.b32.xlu0 %v1300, 48
  %v1443 = vpop.permute.xlu0 %1442
  %1444 = vrot.lane.b32.xlu0 %v1301, 48
  %v1445 = vpop.permute.xlu0 %1444
  %1446 = vrot.lane.b32.xlu0 %v1302, 48
  %v1447 = vpop.permute.xlu0 %1446
  %1448 = vrot.lane.b32.xlu0 %v1303, 48
  %v1449 = vpop.permute.xlu0 %1448
  %1450 = vrot.lane.b32.xlu0 %v1304, 48
  %v1451 = vpop.permute.xlu0 %1450
  %1452 = vrot.lane.b32.xlu0 %v1305, 48
  %v1453 = vpop.permute.xlu0 %1452
  %v1461 = vsel %vm1339, %v1438, 0
  %v1464 = vsel %vm1339, %v1439, 0
  %v1467 = vsel %vm1339, %v1440, 0
  %v1470 = vsel %vm1339, %v1441, 0
  %1472 = vmatprep.subr.mxu0 0.0
  %1473 = vmatpush1.msra.mxu0 %v1443
  %1474 = vmatprep.subr.mxu0 0.0
  %1475 = vmatpush1.msra.mxu0 %v1445
  %1476 = vmatprep.subr.mxu0 0.0
  %1477 = vmatpush1.msra.mxu0 %v1447
  %1478 = vmatprep.subr.mxu0 0.0
  %1479 = vmatpush1.msra.mxu0 %v1449
  %1480 = vmatprep.subr.mxu0 0.0
  %1481 = vmatpush1.msra.mxu0 %v1451
  %1482 = vmatprep.subr.mxu0 0.0
  %1483 = vmatpush1.msra.mxu0 %v1453
  %1484 = vmatprep.subr.mxu0 0.0
  %1485 = vmatpush1.msra.mxu0 0.0
  %1486 = vmatprep.subr.mxu0 0.0
  %1487 = vmatpush1.msra.mxu0 0.0
  %1488 = vmatprep.subr.mxu0 0.0
  %1489 = vmatpush1.msra.mxu0 0.0
  %1490 = vmatprep.subr.mxu0 0.0
  %1491 = vmatpush1.msra.mxu0 0.0
  %1492 = vmatprep.subr.mxu0 0.0
  %1493 = vmatpush1.msra.mxu0 0.0
  %1494 = vmatprep.subr.mxu0 0.0
  %1495 = vmatpush1.msra.mxu0 0.0
  %1496 = vmatprep.subr.mxu0 0.0
  %1497 = vmatpush1.msra.mxu0 0.0
  %1498 = vmatprep.subr.mxu0 0.0
  %1499 = vmatpush1.msra.mxu0 0.0
  %1500 = vmatprep.subr.mxu0 0.0
  %1501 = vmatpush1.msra.mxu0 0.0
  %1502 = vmatprep.subr.mxu0 0.0
  %1503 = vmatpush1.msra.mxu0 0.0
  %1504 = vmatprep.subr.mxu0 0.0
  %1505 = vmatpush1.msra.mxu0 0.0
  %1506 = vmatprep.subr.mxu0 0.0
  %1507 = vmatpush1.msra.mxu0 0.0
  %1508 = vmatprep.subr.mxu0 0.0
  %1509 = vmatpush1.msra.mxu0 0.0
  %1510 = vmatprep.subr.mxu0 0.0
  %1511 = vmatpush1.msra.mxu0 0.0
  %1512 = vmatprep.subr.mxu0 0.0
  %1513 = vmatpush1.msra.mxu0 0.0
  %1514 = vmatprep.subr.mxu0 0.0
  %1515 = vmatpush1.msra.mxu0 0.0
  %1516 = vmatprep.subr.mxu0 0.0
  %1517 = vmatpush1.msra.mxu0 0.0
  %1518 = vmatprep.subr.mxu0 0.0
  %1519 = vmatpush1.msra.mxu0 0.0
  %1520 = vmatprep.subr.mxu0 0.0
  %1521 = vmatpush1.msra.mxu0 0.0
  %1522 = vmatprep.subr.mxu0 0.0
  %1523 = vmatpush1.msra.mxu0 0.0
  %1524 = vmatprep.subr.mxu0 0.0
  %1525 = vmatpush1.msra.mxu0 0.0
  %1526 = vmatprep.subr.mxu0 0.0
  %1527 = vmatpush1.msra.mxu0 0.0
  %1528 = vmatprep.subr.mxu0 0.0
  %1529 = vmatpush1.msra.mxu0 0.0
  %1530 = vmatprep.subr.mxu0 0.0
  %1531 = vmatpush1.msra.mxu0 0.0
  %1532 = vmatprep.subr.mxu0 0.0
  %1533 = vmatpush1.msra.mxu0 0.0
  %1534 = vmatprep.subr.mxu0 0.0
  %1535 = vmatpush1.msra.mxu0 0.0
  %1536 = vmatprep.mubr.f32.mxu0 0.0
  %1537 = vmatmul.mubr.f32.gmra.mrb[0].mxu0 %v1461
  %v1538 = vpop.f32.mrb[0].mxu0
  %v1539 = vadd.f32 0.0, %v1538
  %v1540 = vpop.f32.mrb[0].mxu0
  %1541 = vmatprep.mubr.f32.mxu0 0.0
  %1542 = vmatmul.mubr.f32.gmra.mrb[0].mxu0 %v1464
  %v1543 = vpop.f32.mrb[0].mxu0
  %v1544 = vadd.f32 0.0, %v1543
  %v1545 = vpop.f32.mrb[0].mxu0
  %1546 = vmatprep.mubr.f32.mxu0 0.0
  %1547 = vmatmul.mubr.f32.gmra.mrb[0].mxu0 %v1467
  %v1548 = vpop.f32.mrb[0].mxu0
  %v1549 = vadd.f32 0.0, %v1548
  %v1550 = vpop.f32.mrb[0].mxu0
  %1551 = vmatprep.mubr.f32.mxu0 0.0
  %1552 = vmatmul.mubr.f32.gmra.mrb[0].mxu0 %v1470
  %v1553 = vpop.f32.mrb[0].mxu0
  %v1554 = vadd.f32 0.0, %v1553
  %v1555 = vpop.f32.mrb[0].mxu0
  %1556 = vdwg.mxu0
  %1557 = vrot.lane.b32.xlu0 %v1300, 56
  %v1558 = vpop.permute.xlu0 %1557
  %1559 = vrot.lane.b32.xlu0 %v1301, 56
  %v1560 = vpop.permute.xlu0 %1559
  %1561 = vrot.lane.b32.xlu0 %v1302, 56
  %v1562 = vpop.permute.xlu0 %1561
  %1563 = vrot.lane.b32.xlu0 %v1303, 56
  %v1564 = vpop.permute.xlu0 %1563
  %1565 = vrot.lane.b32.xlu0 %v1304, 56
  %v1566 = vpop.permute.xlu0 %1565
  %1567 = vrot.lane.b32.xlu0 %v1305, 56
  %v1568 = vpop.permute.xlu0 %1567
  %v1576 = vsel %vm1339, %v1306, 0
  %v1579 = vsel %vm1339, %v1307, 0
  %v1582 = vsel %vm1339, %v1308, 0
  %v1585 = vsel %vm1339, %v1309, 0
  %1587 = vmatprep.subr.mxu0 0.0
  %1588 = vmatpush1.msra.mxu0 %v1558
  %1589 = vmatprep.subr.mxu0 0.0
  %1590 = vmatpush1.msra.mxu0 %v1560
  %1591 = vmatprep.subr.mxu0 0.0
  %1592 = vmatpush1.msra.mxu0 %v1562
  %1593 = vmatprep.subr.mxu0 0.0
  %1594 = vmatpush1.msra.mxu0 %v1564
  %1595 = vmatprep.subr.mxu0 0.0
  %1596 = vmatpush1.msra.mxu0 %v1566
  %1597 = vmatprep.subr.mxu0 0.0
  %1598 = vmatpush1.msra.mxu0 %v1568
  %1599 = vmatprep.subr.mxu0 0.0
  %1600 = vmatpush1.msra.mxu0 0.0
  %1601 = vmatprep.subr.mxu0 0.0
  %1602 = vmatpush1.msra.mxu0 0.0
  %1603 = vmatprep.subr.mxu0 0.0
  %1604 = vmatpush1.msra.mxu0 0.0
  %1605 = vmatprep.subr.mxu0 0.0
  %1606 = vmatpush1.msra.mxu0 0.0
  %1607 = vmatprep.subr.mxu0 0.0
  %1608 = vmatpush1.msra.mxu0 0.0
  %1609 = vmatprep.subr.mxu0 0.0
  %1610 = vmatpush1.msra.mxu0 0.0
  %1611 = vmatprep.subr.mxu0 0.0
  %1612 = vmatpush1.msra.mxu0 0.0
  %1613 = vmatprep.subr.mxu0 0.0
  %1614 = vmatpush1.msra.mxu0 0.0
  %1615 = vmatprep.subr.mxu0 0.0
  %1616 = vmatpush1.msra.mxu0 0.0
  %1617 = vmatprep.subr.mxu0 0.0
  %1618 = vmatpush1.msra.mxu0 0.0
  %1619 = vmatprep.subr.mxu0 0.0
  %1620 = vmatpush1.msra.mxu0 0.0
  %1621 = vmatprep.subr.mxu0 0.0
  %1622 = vmatpush1.msra.mxu0 0.0
  %1623 = vmatprep.subr.mxu0 0.0
  %1624 = vmatpush1.msra.mxu0 0.0
  %1625 = vmatprep.subr.mxu0 0.0
  %1626 = vmatpush1.msra.mxu0 0.0
  %1627 = vmatprep.subr.mxu0 0.0
  %1628 = vmatpush1.msra.mxu0 0.0
  %1629 = vmatprep.subr.mxu0 0.0
  %1630 = vmatpush1.msra.mxu0 0.0
  %1631 = vmatprep.subr.mxu0 0.0
  %1632 = vmatpush1.msra.mxu0 0.0
  %1633 = vmatprep.subr.mxu0 0.0
  %1634 = vmatpush1.msra.mxu0 0.0
  %1635 = vmatprep.subr.mxu0 0.0
  %1636 = vmatpush1.msra.mxu0 0.0
  %1637 = vmatprep.subr.mxu0 0.0
  %1638 = vmatpush1.msra.mxu0 0.0
  %1639 = vmatprep.subr.mxu0 0.0
  %1640 = vmatpush1.msra.mxu0 0.0
  %1641 = vmatprep.subr.mxu0 0.0
  %1642 = vmatpush1.msra.mxu0 0.0
  %1643 = vmatprep.subr.mxu0 0.0
  %1644 = vmatpush1.msra.mxu0 0.0
  %1645 = vmatprep.subr.mxu0 0.0
  %1646 = vmatpush1.msra.mxu0 0.0
  %1647 = vmatprep.subr.mxu0 0.0
  %1648 = vmatpush1.msra.mxu0 0.0
  %1649 = vmatprep.subr.mxu0 0.0
  %1650 = vmatpush1.msra.mxu0 0.0
  %1651 = vmatprep.mubr.f32.mxu0 0.0
  %1652 = vmatmul.mubr.f32.gmra.mrb[0].mxu0 %v1576
  %v1653 = vpop.f32.mrb[0].mxu0
  %v1654 = vadd.f32 %v1419, %v1653
  %v1655 = vpop.f32.mrb[0].mxu0
  %1656 = vmatprep.mubr.f32.mxu0 0.0
  %1657 = vmatmul.mubr.f32.gmra.mrb[0].mxu0 %v1579
  %v1658 = vpop.f32.mrb[0].mxu0
  %v1659 = vadd.f32 %v1424, %v1658
  %v1660 = vpop.f32.mrb[0].mxu0
  %1661 = vmatprep.mubr.f32.mxu0 0.0
  %1662 = vmatmul.mubr.f32.gmra.mrb[0].mxu0 %v1582
  %v1663 = vpop.f32.mrb[0].mxu0
  %v1664 = vadd.f32 %v1429, %v1663
  %v1665 = vpop.f32.mrb[0].mxu0
  %1666 = vmatprep.mubr.f32.mxu0 0.0
  %1667 = vmatmul.mubr.f32.gmra.mrb[0].mxu0 %v1585
  %v1668 = vpop.f32.mrb[0].mxu0
  %v1669 = vadd.f32 %v1434, %v1668
  %v1670 = vpop.f32.mrb[0].mxu0
  %1671 = vdwg.mxu0
  %v1672 = vadd.f32 %v1654, %v1539
  %v1673 = vadd.f32 %v1659, %v1544
  %v1674 = vadd.f32 %v1664, %v1549
  %v1675 = vadd.f32 %v1669, %v1554
  %1676 = vst.msk [vmem:[%s5] sm:$0xff] %vm25, %v1672
  %1677 = vst.msk [vmem:[%s5 + $0x8] sm:$0xff] %vm25, %v1673
  %1678 = vst.msk [vmem:[%s5 + $0x10] sm:$0xff] %vm25, %v1674
  %1679 = vst.msk [vmem:[%s5 + $0x18] sm:$0xff] %vm25, %v1675
  // Predicated region
  $region22: #{tpu_custom_call.1} parent=0 // pred_check
    _
  $region23: #{tpu_custom_call.1} parent=0 // pred_check_branch
    %1681 = sbr.rel (0) target = $region25
  $region24: #{tpu_custom_call.1} parent=0 // pred_region
    _
  $region25: #{tpu_custom_call.1} parent=0 // pred_fallthru
    _
  // Predicated region
  $region26: #{tpu_custom_call.1} parent=0 // pred_check
    _
  $region27: #{tpu_custom_call.1} parent=0 // pred_check_branch
    %1683 = sbr.rel (0) target = $region29
  $region28: #{tpu_custom_call.1} parent=0 // pred_region
    _
  $region29: #{tpu_custom_call.1} parent=0 // pred_fallthru
    _

</llo_original>
